<compile_context>
chip_gen: v7x
topology: tpu7x:2x2x1
jax: 0.10.0
libtpu: 0.0.40
codegen_flags: <defaults>
</compile_context>

<pallas_src>
import functools

import jax
import jax.numpy as jnp
from jax import lax
from jax.experimental import pallas as pl
from jax.experimental.pallas import tpu as pltpu


def _round_up(x, m):
    return ((x + m - 1) // m) * m


def _device_kind():
    try:
        return jax.devices()[0].device_kind.lower()
    except Exception:
        return ""


def _triplet_margin_cos_kernel(a_ref, p_ref, n_ref, o_ref, *, margin, eps,
                               true_b, block_rows, tiles_per_core,
                               compute_dtype, mask_padding):
    c = pl.program_id(0)  # outer "parallel" (core) index
    i = pl.program_id(1)  # batch-tile index (reduction axis)

    # Zero this core's accumulator at its first batch tile.
    @pl.when(i == 0)
    def _init():
        o_ref[...] = jnp.zeros_like(o_ref)

    f32 = jnp.float32
    a = a_ref[...].astype(compute_dtype)
    p = p_ref[...].astype(compute_dtype)
    n = n_ref[...].astype(compute_dtype)

    d = a.shape[-1]
    ones = jnp.ones((d, 1), compute_dtype)

    if compute_dtype == jnp.float32:
        # Full-f32 contract precision so the MXU reduction matches the f32
        # VPU/XLU reduction well within the test tolerance.
        dot_kwargs = dict(preferred_element_type=f32,
                          precision=lax.Precision.HIGHEST)
    else:
        dot_kwargs = dict(preferred_element_type=f32)

    def rowdot(x, y):
        # Elementwise product on the VPU; lane reduction on the (idle) MXU via
        # a ones-vector matmul instead of five XLU cross-lane reductions.
        return jnp.dot(x * y, ones, **dot_kwargs)  # (TB, 1) f32

    eps2 = float(eps) * float(eps)
    # Anchor squared norm computed once and shared by both cosine terms.
    na2 = jnp.maximum(rowdot(a, a), eps2)
    np2 = jnp.maximum(rowdot(p, p), eps2)
    nn2 = jnp.maximum(rowdot(n, n), eps2)

    # cos(x, y) = x.y / (max(||x||, eps) * max(||y||, eps))
    #           = x.y * rsqrt(max(||x||^2, eps^2) * max(||y||^2, eps^2))
    d_p = rowdot(a, p) * lax.rsqrt(na2 * np2)  # (TB, 1)
    d_n = rowdot(a, n) * lax.rsqrt(na2 * nn2)  # (TB, 1)

    hinge = jnp.maximum(margin - d_p + d_n, 0.0)  # (TB, 1)

    if mask_padding:
        # Only tiles whose row range crosses the true-batch boundary pay for
        # the iota/compare/select; steady-state tiles take the cheap branch.
        row0 = (c * tiles_per_core + i) * block_rows
        crosses = row0 + block_rows > true_b

        @pl.when(crosses)
        def _masked_sum():
            rows = row0 + lax.broadcasted_iota(jnp.int32, hinge.shape, 0)
            h = jnp.where(rows < true_b, hinge, 0.0)
            o_ref[...] += jnp.sum(h, axis=0, keepdims=True)

        @pl.when(jnp.logical_not(crosses))
        def _full_sum():
            o_ref[...] += jnp.sum(hinge, axis=0, keepdims=True)
    else:
        o_ref[...] += jnp.sum(hinge, axis=0, keepdims=True)


def triplet_margin_cos_loss(anchor, positive, negative, margin, eps=1e-6, *,
                            num_cores=None, tile_budget_bytes=None,
                            vmem_limit_bytes=None):
    """Forward pass of TripletMarginCosLoss(margin). Returns a scalar f32."""
    assert anchor.shape == positive.shape == negative.shape
    assert anchor.ndim == 2
    b, d = anchor.shape
    dtype = anchor.dtype
    itemsize = jnp.dtype(dtype).itemsize
    # Sublane packing: 8 rows (f32), 16 (bf16), 32 (int8/fp8).
    sublane = max(8, 32 // itemsize)

    kind = _device_kind()
    is_v7 = "v7" in kind
    if num_cores is None:
        # 2 TensorCores per chip on megacore (v4/v5p) and v7x; 1 on v5e/v6e,
        # where an extra core axis would only add padded tiles + grid steps.
        num_cores = 2 if (is_v7 or "v4" in kind or "v5p" in kind) else 1
    if tile_budget_bytes is None:
        # Total double-buffered input-tile footprint (3 inputs x 2 buffers).
        # v7x has 64 MiB VMEM per TC (vs 128 MiB on v5e/v6e) -> smaller tiles.
        tile_budget_bytes = (16 if is_v7 else 32) * 1024 * 1024
    if vmem_limit_bytes is None:
        vmem_limit_bytes = (48 if is_v7 else 64) * 1024 * 1024

    # bf16 math stays in bf16 where there is a bf16 VALU (v6e/v7x); promote to
    # f32 on v5e (no bf16 VALU) and for f32 inputs.
    is_v5e = ("v5e" in kind) or ("v5 lite" in kind) or ("v5litepod" in kind)
    if dtype == jnp.bfloat16 and not is_v5e:
        compute_dtype = jnp.bfloat16
    else:
        compute_dtype = jnp.float32

    # Batch tile: largest sublane-aligned row count whose double-buffered
    # input tiles (plus a couple of f32 row-product temporaries) fit budget.
    bytes_per_row = d * (3 * 2 * itemsize + 2 * 4)
    tb = tile_budget_bytes // max(bytes_per_row, 1)
    tb = max(sublane, (tb // sublane) * sublane)
    tb = min(tb, _round_up(pl.cdiv(b, num_cores), sublane))

    rows_per_core = _round_up(pl.cdiv(b, num_cores), tb)
    tiles_per_core = rows_per_core // tb
    b_padded = num_cores * rows_per_core

    if b_padded != b:
        pad = ((0, b_padded - b), (0, 0))
        anchor = jnp.pad(anchor, pad)
        positive = jnp.pad(positive, pad)
        negative = jnp.pad(negative, pad)

    kernel = functools.partial(
        _triplet_margin_cos_kernel,
        margin=float(margin), eps=float(eps), true_b=b, block_rows=tb,
        tiles_per_core=tiles_per_core, compute_dtype=compute_dtype,
        mask_padding=(b_padded != b))

    def in_map(c, i):
        return (c * tiles_per_core + i, 0)

    # Purely bandwidth-bound: ~10 flops/element (5 products + 5 MXU dots),
    # 2 rsqrt per row, 3 input tiles streamed exactly once.
    cost = pl.CostEstimate(
        flops=int(10 * b_padded * d),
        transcendentals=int(2 * b_padded),
        bytes_accessed=int(3 * b_padded * d * itemsize + num_cores * 4))

    # TODO(synk): for very large D the un-tiled feature axis (plus its double
    # buffer) can exceed the VMEM limit; add a D-tiling/accumulation axis.
    # TODO(synk): on v7x, sweep pipeline_mode=pl.Buffered(3) on the in_specs
    # if a trace shows exposed DMA-issue latency with the smaller tiles.
    out = pl.pallas_call(
        kernel,
        out_shape=jax.ShapeDtypeStruct((num_cores, 1, 1), jnp.float32),
        grid_spec=pltpu.PrefetchScalarGridSpec(
            num_scalar_prefetch=0,
            grid=(num_cores, tiles_per_core),
            in_specs=[
                pl.BlockSpec((tb, d), in_map),
                pl.BlockSpec((tb, d), in_map),
                pl.BlockSpec((tb, d), in_map),
            ],
            out_specs=pl.BlockSpec((None, 1, 1), lambda c, i: (c, 0, 0)),
        ),
        compiler_params=pltpu.CompilerParams(
            dimension_semantics=("parallel", "arbitrary"),
            vmem_limit_bytes=vmem_limit_bytes),
        cost_estimate=cost,
    )(anchor, positive, negative)

    # Cross-core partial sums -> mean over the true batch size.
    return jnp.sum(out) / b


def _reference(anchor, positive, negative, margin, eps=1e-6):
    def cos_sim(x, y):
        dot = jnp.sum(x * y, axis=1)
        nx = jnp.maximum(jnp.linalg.norm(x, axis=1), eps)
        ny = jnp.maximum(jnp.linalg.norm(y, axis=1), eps)
        return dot / (nx * ny)

    d_p = cos_sim(anchor, positive)
    d_n = cos_sim(anchor, negative)
    return jnp.mean(jnp.maximum(margin - d_p + d_n, 0.0))


if __name__ == "__main__":
    key = jax.random.PRNGKey(0)
    k1, k2, k3 = jax.random.split(key, 3)

    B, D = 16, 128  # small (batch, feature) shapes
    margin = 0.5

    anchor = jax.random.normal(k1, (B, D), dtype=jnp.float32)
    positive = jax.random.normal(k2, (B, D), dtype=jnp.float32)
    negative = jax.random.normal(k3, (B, D), dtype=jnp.float32)

    loss = triplet_margin_cos_loss(anchor, positive, negative, margin)
    loss = jax.block_until_ready(loss)
    ref = _reference(anchor, positive, negative, margin)
    assert jnp.allclose(loss, ref, atol=1e-5, rtol=1e-5), (loss, ref)

    # Uneven batch exercises the padded-row masking path.
    B2 = 13
    loss2 = triplet_margin_cos_loss(
        anchor[:B2], positive[:B2], negative[:B2], margin)
    loss2 = jax.block_until_ready(loss2)
    ref2 = _reference(anchor[:B2], positive[:B2], negative[:B2], margin)
    assert jnp.allclose(loss2, ref2, atol=1e-5, rtol=1e-5), (loss2, ref2)

    print("KERNEL_OK")
</pallas_src>

<mosaic_0001>
module attributes {stable_mosaic.version = 11 : i64} {
  func.func @_triplet_margin_cos_kernel(%arg0: i32, %arg1: i32, %arg2: memref<16x128xf32, #tpu.memory_space<vmem>>, %arg3: memref<16x128xf32, #tpu.memory_space<vmem>>, %arg4: memref<16x128xf32, #tpu.memory_space<vmem>>, %arg5: memref<1x1x1xf32, #tpu.memory_space<vmem>>) attributes {dimension_semantics = [#tpu.dimension_semantics<parallel>, #tpu.dimension_semantics<arbitrary>], iteration_bounds = array<i64: 1, 1>, scalar_prefetch = 0 : i64, scratch_operands = 0 : i64, tpu.core_type = #tpu.core_type<tc>, window_params = [{transform_indices = @transform_0, window_bounds = array<i64: 16, 128>}, {transform_indices = @transform_1, window_bounds = array<i64: 16, 128>}, {transform_indices = @transform_2, window_bounds = array<i64: 16, 128>}, {transform_indices = @transform_3, window_bounds = array<i64: 1, 1, 1>}]} {
    %c0_i32 = arith.constant 0 : i32
    %0 = arith.cmpi eq, %arg1, %c0_i32 : i32
    %1 = arith.extui %0 : i1 to i32
    %c0_i32_0 = arith.constant 0 : i32
    %2 = arith.cmpi ne, %1, %c0_i32_0 : i32
    scf.if %2 {
      %cst_23 = arith.constant 0.000000e+00 : f32
      %42 = vector.broadcast %cst_23 : f32 to vector<1x1xf32>
      %c0_24 = arith.constant 0 : index
      %c0_25 = arith.constant 0 : index
      %c0_26 = arith.constant 0 : index
      %43 = vector.load %arg5[%c0_24, %c0_25, %c0_26] : memref<1x1x1xf32, #tpu.memory_space<vmem>>, vector<1x1x1xf32>
      %44 = vector.shape_cast %43 : vector<1x1x1xf32> to vector<1x1xf32>
      %45 = vector.shape_cast %42 : vector<1x1xf32> to vector<1x1x1xf32>
      tpu.vector_store %arg5[%c0_24, %c0_25, %c0_26], %45 {strides = array<i32>} : memref<1x1x1xf32, #tpu.memory_space<vmem>>, vector<1x1x1xf32>,
    } else {
    }
    %c0 = arith.constant 0 : index
    %c0_1 = arith.constant 0 : index
    %3 = vector.load %arg2[%c0, %c0_1] : memref<16x128xf32, #tpu.memory_space<vmem>>, vector<16x128xf32>
    %c0_2 = arith.constant 0 : index
    %c0_3 = arith.constant 0 : index
    %4 = vector.load %arg3[%c0_2, %c0_3] : memref<16x128xf32, #tpu.memory_space<vmem>>, vector<16x128xf32>
    %c0_4 = arith.constant 0 : index
    %c0_5 = arith.constant 0 : index
    %5 = vector.load %arg4[%c0_4, %c0_5] : memref<16x128xf32, #tpu.memory_space<vmem>>, vector<16x128xf32>
    %cst = arith.constant 1.000000e+00 : f32
    %6 = vector.broadcast %cst : f32 to vector<128x1xf32>
    %7 = arith.mulf %3, %3 : vector<16x128xf32>
    %cst_6 = arith.constant dense<0.000000e+00> : vector<16x1xf32>
    %8 = tpu.matmul %7, %6, %cst_6 {dimension_numbers = #tpu.dot_dimension_numbers<[1], [0], [0], [1], [0, 0, 1, 1], [], []>, precision = #tpu.contract_precision<fp32>} : vector<16x128xf32>, vector<128x1xf32>, vector<16x1xf32> -> vector<16x1xf32>
    %cst_7 = arith.constant 9.99999996E-13 : f32
    %9 = vector.broadcast %cst_7 : f32 to vector<16x1xf32>
    %10 = arith.maximumf %8, %9 : vector<16x1xf32>
    %11 = arith.mulf %4, %4 : vector<16x128xf32>
    %cst_8 = arith.constant dense<0.000000e+00> : vector<16x1xf32>
    %12 = tpu.matmul %11, %6, %cst_8 {dimension_numbers = #tpu.dot_dimension_numbers<[1], [0], [0], [1], [0, 0, 1, 1], [], []>, precision = #tpu.contract_precision<fp32>} : vector<16x128xf32>, vector<128x1xf32>, vector<16x1xf32> -> vector<16x1xf32>
    %cst_9 = arith.constant 9.99999996E-13 : f32
    %13 = vector.broadcast %cst_9 : f32 to vector<16x1xf32>
    %14 = arith.maximumf %12, %13 : vector<16x1xf32>
    %15 = arith.mulf %5, %5 : vector<16x128xf32>
    %cst_10 = arith.constant dense<0.000000e+00> : vector<16x1xf32>
    %16 = tpu.matmul %15, %6, %cst_10 {dimension_numbers = #tpu.dot_dimension_numbers<[1], [0], [0], [1], [0, 0, 1, 1], [], []>, precision = #tpu.contract_precision<fp32>} : vector<16x128xf32>, vector<128x1xf32>, vector<16x1xf32> -> vector<16x1xf32>
    %cst_11 = arith.constant 9.99999996E-13 : f32
    %17 = vector.broadcast %cst_11 : f32 to vector<16x1xf32>
    %18 = arith.maximumf %16, %17 : vector<16x1xf32>
    %19 = arith.mulf %3, %4 : vector<16x128xf32>
    %cst_12 = arith.constant dense<0.000000e+00> : vector<16x1xf32>
    %20 = tpu.matmul %19, %6, %cst_12 {dimension_numbers = #tpu.dot_dimension_numbers<[1], [0], [0], [1], [0, 0, 1, 1], [], []>, precision = #tpu.contract_precision<fp32>} : vector<16x128xf32>, vector<128x1xf32>, vector<16x1xf32> -> vector<16x1xf32>
    %21 = arith.mulf %10, %14 : vector<16x1xf32>
    %22 = math.rsqrt %21 : vector<16x1xf32>
    %23 = arith.mulf %20, %22 : vector<16x1xf32>
    %24 = arith.mulf %3, %5 : vector<16x128xf32>
    %cst_13 = arith.constant dense<0.000000e+00> : vector<16x1xf32>
    %25 = tpu.matmul %24, %6, %cst_13 {dimension_numbers = #tpu.dot_dimension_numbers<[1], [0], [0], [1], [0, 0, 1, 1], [], []>, precision = #tpu.contract_precision<fp32>} : vector<16x128xf32>, vector<128x1xf32>, vector<16x1xf32> -> vector<16x1xf32>
    %26 = arith.mulf %10, %18 : vector<16x1xf32>
    %27 = math.rsqrt %26 : vector<16x1xf32>
    %28 = arith.mulf %25, %27 : vector<16x1xf32>
    %cst_14 = arith.constant 5.000000e-01 : f32
    %29 = vector.broadcast %cst_14 : f32 to vector<16x1xf32>
    %30 = arith.subf %29, %23 : vector<16x1xf32>
    %31 = arith.addf %30, %28 : vector<16x1xf32>
    %cst_15 = arith.constant 0.000000e+00 : f32
    %32 = vector.broadcast %cst_15 : f32 to vector<16x1xf32>
    %33 = arith.maximumf %31, %32 : vector<16x1xf32>
    %c0_16 = arith.constant 0 : index
    %c0_17 = arith.constant 0 : index
    %c0_18 = arith.constant 0 : index
    %34 = vector.load %arg5[%c0_16, %c0_17, %c0_18] : memref<1x1x1xf32, #tpu.memory_space<vmem>>, vector<1x1x1xf32>
    %35 = vector.shape_cast %34 : vector<1x1x1xf32> to vector<1x1xf32>
    %cst_19 = arith.constant dense<0.000000e+00> : vector<1xf32>
    %36 = vector.multi_reduction <add>, %33, %cst_19 [0] : vector<16x1xf32> to vector<1xf32>
    %37 = vector.shape_cast %36 : vector<1xf32> to vector<1x1xf32>
    %38 = arith.addf %35, %37 : vector<1x1xf32>
    %c0_20 = arith.constant 0 : index
    %c0_21 = arith.constant 0 : index
    %c0_22 = arith.constant 0 : index
    %39 = vector.load %arg5[%c0_20, %c0_21, %c0_22] : memref<1x1x1xf32, #tpu.memory_space<vmem>>, vector<1x1x1xf32>
    %40 = vector.shape_cast %39 : vector<1x1x1xf32> to vector<1x1xf32>
    %41 = vector.shape_cast %38 : vector<1x1xf32> to vector<1x1x1xf32>
    tpu.vector_store %arg5[%c0_20, %c0_21, %c0_22], %41 {strides = array<i32>} : memref<1x1x1xf32, #tpu.memory_space<vmem>>, vector<1x1x1xf32>,
    return
  }
  func.func @transform_0(%arg0: i32, %arg1: i32) -> (i32, i32) {
    %c1_i32 = arith.constant 1 : i32
    %0 = arith.muli %arg0, %c1_i32 : i32
    %1 = arith.addi %0, %arg1 : i32
    %c0_i32 = arith.constant 0 : i32
    %c0_i32_0 = arith.constant 0 : i32
    return %1, %c0_i32 : i32, i32
  }
  func.func @transform_1(%arg0: i32, %arg1: i32) -> (i32, i32) {
    %c1_i32 = arith.constant 1 : i32
    %0 = arith.muli %arg0, %c1_i32 : i32
    %1 = arith.addi %0, %arg1 : i32
    %c0_i32 = arith.constant 0 : i32
    %c0_i32_0 = arith.constant 0 : i32
    return %1, %c0_i32 : i32, i32
  }
  func.func @transform_2(%arg0: i32, %arg1: i32) -> (i32, i32) {
    %c1_i32 = arith.constant 1 : i32
    %0 = arith.muli %arg0, %c1_i32 : i32
    %1 = arith.addi %0, %arg1 : i32
    %c0_i32 = arith.constant 0 : i32
    %c0_i32_0 = arith.constant 0 : i32
    return %1, %c0_i32 : i32, i32
  }
  func.func @transform_3(%arg0: i32, %arg1: i32) -> (i32, i32, i32) {
    %c0_i32 = arith.constant 0 : i32
    %c0_i32_0 = arith.constant 0 : i32
    %c0_i32_1 = arith.constant 0 : i32
    return %arg0, %c0_i32, %c0_i32_0 : i32, i32, i32
  }
}

</mosaic_0001>

<llo_original>
// kernel: tpu_custom_call.1
$region0: #{tpu_custom_call.1}
  #allocation0 [shape = 'u32[]', space=smem, size = 0x4, offset = 0x4, fixed_abs, tag = 'smem constant byte address 0x4 - core index']
  #allocation1 [shape = 'u32[144,128]{1,0:T(1,128)}', space=vmem, size = 0x12000, scoped, tag = 'internal scratch']
  %s0 = inlined_call_operand.hbm [shape: f32[16,128], index: 0, kind: input, shape index: {}]
  %s1 = inlined_call_operand.hbm [shape: f32[16,128], index: 1, kind: input, shape index: {}]
  %s2 = inlined_call_operand.hbm [shape: f32[16,128], index: 2, kind: input, shape index: {}]
  %s3 = inlined_call_operand.hbm [shape: f32[1,1,1], index: 3, kind: output, shape index: {}]
  %s4 = sld [smem:[#allocation0]]
  $region38: #{tpu_custom_call.1} parent=0
    _
  %s6 = ssub.s32 1, %s4
  %s7 = scalar_select 0, %s6, %s4
  $region1: #{tpu_custom_call.1} parent=0
    #allocation2 [shape = 'u8[8192]{0}', space=vmem, size = 0x2000, scoped, tag = 'input window, operand 0, single buffered']
    #allocation3 [shape = 's32[1]{0}', space=sflag, size = 0x4, scoped, tag = 'scoped memory for tpu_custom_call.1']
    #allocation4 [shape = 's32[1]{0}', space=sflag, size = 0x4, scoped, tag = 'scoped memory for tpu_custom_call.1']
    #allocation5 [shape = 'u8[8192]{0}', space=vmem, size = 0x2000, scoped, tag = 'input window, operand 1, single buffered']
    #allocation6 [shape = 's32[1]{0}', space=sflag, size = 0x4, scoped, tag = 'scoped memory for tpu_custom_call.1']
    #allocation7 [shape = 'u8[8192]{0}', space=vmem, size = 0x2000, scoped, tag = 'input window, operand 2, single buffered']
    #allocation8 [shape = 'u8[512]{0}', space=vmem, size = 0x400, scoped, tag = 'output window, operand 0, single buffered']
    %8 = vsyncpa [#allocation3], 0
    %9 = vsyncpa [#allocation6], 0
    %10 = vsyncpa [#allocation4], 0
    // Predicated region
    $region2: #{tpu_custom_call.1} parent=1 // pred_check
      _
    $region3: #{tpu_custom_call.1} parent=1 // pred_check_branch
      %12 = sbr.rel (0) target = $region5
    $region4: #{tpu_custom_call.1} parent=1 // pred_region
      %s13 = sadd.s32 0, 0
      %s14 = smul.u32 2, %s13
      %s16 = ssub.s32 256, 256
      %17 = vsyncadd [#allocation3], %s16
      %s18 = smul.addr %s14, 128
      %s19 = scalar_lea.hbm %s0, %s18
      %s20 = sshll.u32 [#allocation2], 4
      %s21 = int_to_ptr.vmem [resolvable:$true] %s20
      %26 = dma.hbm_to_vmem [thread:$0]  %s19, 256, %s21, [#allocation3], 128, 128, 8
    $region5: #{tpu_custom_call.1} parent=1 // pred_fallthru
      _
    // Predicated region
    $region6: #{tpu_custom_call.1} parent=1 // pred_check
      _
    $region7: #{tpu_custom_call.1} parent=1 // pred_check_branch
      %28 = sbr.rel (0) target = $region9
    $region8: #{tpu_custom_call.1} parent=1 // pred_region
      %s29 = sadd.s32 0, 0
      %s30 = smul.u32 2, %s29
      %s32 = ssub.s32 256, 256
      %33 = vsyncadd [#allocation6], %s32
      %s34 = smul.addr %s30, 128
      %s35 = scalar_lea.hbm %s1, %s34
      %s36 = sshll.u32 [#allocation5], 4
      %s37 = int_to_ptr.vmem [resolvable:$true] %s36
      %42 = dma.hbm_to_vmem [thread:$0]  %s35, 256, %s37, [#allocation6], 128, 128, 8
    $region9: #{tpu_custom_call.1} parent=1 // pred_fallthru
      _
    // Predicated region
    $region10: #{tpu_custom_call.1} parent=1 // pred_check
      _
    $region11: #{tpu_custom_call.1} parent=1 // pred_check_branch
      %44 = sbr.rel (0) target = $region13
    $region12: #{tpu_custom_call.1} parent=1 // pred_region
      %s45 = sadd.s32 0, 0
      %s46 = smul.u32 2, %s45
      %s48 = ssub.s32 256, 256
      %49 = vsyncadd [#allocation6], %s48
      %s50 = smul.addr %s46, 128
      %s51 = scalar_lea.hbm %s2, %s50
      %s52 = sshll.u32 [#allocation7], 4
      %s53 = int_to_ptr.vmem [resolvable:$true] %s52
      %58 = dma.hbm_to_vmem [thread:$0]  %s51, 256, %s53, [#allocation6], 128, 128, 8
    $region13: #{tpu_custom_call.1} parent=1 // pred_fallthru
      _
    // Predicated region
    $region14: #{tpu_custom_call.1} parent=1 // pred_check
      _
    $region15: #{tpu_custom_call.1} parent=1 // pred_check_branch
      %60 = sbr.rel (0) target = $region17
    $region16: #{tpu_custom_call.1} parent=1 // pred_region
      %61 = dma.done [#allocation3], 256
    $region17: #{tpu_custom_call.1} parent=1 // pred_fallthru
      _
    // Predicated region
    $region18: #{tpu_custom_call.1} parent=1 // pred_check
      _
    $region19: #{tpu_custom_call.1} parent=1 // pred_check_branch
      %63 = sbr.rel (0) target = $region21
    $region20: #{tpu_custom_call.1} parent=1 // pred_region
      %64 = dma.done [#allocation6], 256
    $region21: #{tpu_custom_call.1} parent=1 // pred_fallthru
      _
    // Predicated region
    $region22: #{tpu_custom_call.1} parent=1 // pred_check
      _
    $region23: #{tpu_custom_call.1} parent=1 // pred_check_branch
      %66 = sbr.rel (0) target = $region25
    $region24: #{tpu_custom_call.1} parent=1 // pred_region
      %67 = dma.done [#allocation6], 256
    $region25: #{tpu_custom_call.1} parent=1 // pred_fallthru
      _
    %s68 = sadd.s32 0, 0
    %s69 = smul.u32 2, %s68
    %s70 = sadd.s32 0, 0
    %s71 = smul.u32 2, %s70
    %s72 = sadd.s32 0, 0
    %s73 = smul.u32 2, %s72
    %p74 = scmp.eq.s32.totalorder 0, 0
    // Predicated region
    $region26: #{tpu_custom_call.1} parent=1 // pred_check
      %p75 = pneg %p74
    $region27: #{tpu_custom_call.1} parent=1 // pred_check_branch
      %77 = sbr.rel (%p75) target = $region29
    $region28: #{tpu_custom_call.1} parent=1 // pred_region
      %vm78 = vcmask 0
      %79 = vst.msk [vmem:[#allocation8] sm:$0x1] %vm78, 0.0
    $region29: #{tpu_custom_call.1} parent=1 // pred_fallthru
      _
    %v80 = vld [vmem:[#allocation2] sm:$0xff]
    %v81 = vld [vmem:[#allocation2 + $0x8] sm:$0xff]
    %v82 = vld [vmem:[#allocation5] sm:$0xff]
    %v83 = vld [vmem:[#allocation5 + $0x8] sm:$0xff]
    %v84 = vld [vmem:[#allocation7] sm:$0xff]
    %v85 = vld [vmem:[#allocation7 + $0x8] sm:$0xff]
    %v86 = vmul.f32 %v80, %v80
    %v87 = vmul.f32 %v81, %v81
    %88 = vmatprep.subr.mxu0 0.0
    %89 = vmatpush1.msra.mxu0 1.0
    %90 = vmatprep.subr.mxu0 0.0
    %91 = vmatpush1.msra.mxu0 1.0
    %92 = vmatprep.subr.mxu0 0.0
    %93 = vmatpush1.msra.mxu0 1.0
    %94 = vmatprep.subr.mxu0 0.0
    %95 = vmatpush1.msra.mxu0 1.0
    %96 = vmatprep.subr.mxu0 0.0
    %97 = vmatpush1.msra.mxu0 1.0
    %98 = vmatprep.subr.mxu0 0.0
    %99 = vmatpush1.msra.mxu0 1.0
    %100 = vmatprep.subr.mxu0 0.0
    %101 = vmatpush1.msra.mxu0 1.0
    %102 = vmatprep.subr.mxu0 0.0
    %103 = vmatpush1.msra.mxu0 1.0
    %104 = vmatprep.subr.mxu0 0.0
    %105 = vmatpush1.msra.mxu0 1.0
    %106 = vmatprep.subr.mxu0 0.0
    %107 = vmatpush1.msra.mxu0 1.0
    %108 = vmatprep.subr.mxu0 0.0
    %109 = vmatpush1.msra.mxu0 1.0
    %110 = vmatprep.subr.mxu0 0.0
    %111 = vmatpush1.msra.mxu0 1.0
    %112 = vmatprep.subr.mxu0 0.0
    %113 = vmatpush1.msra.mxu0 1.0
    %114 = vmatprep.subr.mxu0 0.0
    %115 = vmatpush1.msra.mxu0 1.0
    %116 = vmatprep.subr.mxu0 0.0
    %117 = vmatpush1.msra.mxu0 1.0
    %118 = vmatprep.subr.mxu0 0.0
    %119 = vmatpush1.msra.mxu0 1.0
    %120 = vmatprep.subr.mxu0 0.0
    %121 = vmatpush1.msra.mxu0 0.0
    %122 = vmatprep.subr.mxu0 0.0
    %123 = vmatpush1.msra.mxu0 0.0
    %124 = vmatprep.subr.mxu0 0.0
    %125 = vmatpush1.msra.mxu0 0.0
    %126 = vmatprep.subr.mxu0 0.0
    %127 = vmatpush1.msra.mxu0 0.0
    %128 = vmatprep.subr.mxu0 0.0
    %129 = vmatpush1.msra.mxu0 0.0
    %130 = vmatprep.subr.mxu0 0.0
    %131 = vmatpush1.msra.mxu0 0.0
    %132 = vmatprep.subr.mxu0 0.0
    %133 = vmatpush1.msra.mxu0 0.0
    %134 = vmatprep.subr.mxu0 0.0
    %135 = vmatpush1.msra.mxu0 0.0
    %136 = vmatprep.subr.mxu0 0.0
    %137 = vmatpush1.msra.mxu0 0.0
    %138 = vmatprep.subr.mxu0 0.0
    %139 = vmatpush1.msra.mxu0 0.0
    %140 = vmatprep.subr.mxu0 0.0
    %141 = vmatpush1.msra.mxu0 0.0
    %142 = vmatprep.subr.mxu0 0.0
    %143 = vmatpush1.msra.mxu0 0.0
    %144 = vmatprep.subr.mxu0 0.0
    %145 = vmatpush1.msra.mxu0 0.0
    %146 = vmatprep.subr.mxu0 0.0
    %147 = vmatpush1.msra.mxu0 0.0
    %148 = vmatprep.subr.mxu0 0.0
    %149 = vmatpush1.msra.mxu0 0.0
    %150 = vmatprep.subr.mxu0 0.0
    %151 = vmatpush1.msra.mxu0 0.0
    %152 = vmatprep.mubr.f32.mxu0 0.0
    %v153 = vand.u32 %v86, 4294901760
    %v154 = vsub.f32 %v86, %v153
    %v155 = vand.u32 %v154, 4294901760
    %v156 = vsub.f32 %v154, %v155
    %v157 = vand.u32 %v156, 4294901760
    %158 = vmatmul.mubr.f32.gmra.mrb[0].mxu0 %v157
    %v159 = vpop.f32.mrb[0].mxu0
    %v160 = vadd.f32 0.0, %v159
    %v161 = vpop.f32.mrb[0].mxu0
    %162 = vmatprep.mubr.f32.mxu0 0.0
    %v163 = vand.u32 %v87, 4294901760
    %v164 = vsub.f32 %v87, %v163
    %v165 = vand.u32 %v164, 4294901760
    %v166 = vsub.f32 %v164, %v165
    %v167 = vand.u32 %v166, 4294901760
    %168 = vmatmul.mubr.f32.gmra.mrb[0].mxu0 %v167
    %v169 = vpop.f32.mrb[0].mxu0
    %v170 = vadd.f32 0.0, %v169
    %v171 = vpop.f32.mrb[0].mxu0
    %172 = vdwg.mxu0
    %173 = vmatprep.subr.mxu0 0.0
    %174 = vmatpush1.msra.mxu0 0.0
    %175 = vmatprep.subr.mxu0 0.0
    %176 = vmatpush1.msra.mxu0 0.0
    %177 = vmatprep.subr.mxu0 0.0
    %178 = vmatpush1.msra.mxu0 0.0
    %179 = vmatprep.subr.mxu0 0.0
    %180 = vmatpush1.msra.mxu0 0.0
    %181 = vmatprep.subr.mxu0 0.0
    %182 = vmatpush1.msra.mxu0 0.0
    %183 = vmatprep.subr.mxu0 0.0
    %184 = vmatpush1.msra.mxu0 0.0
    %185 = vmatprep.subr.mxu0 0.0
    %186 = vmatpush1.msra.mxu0 0.0
    %187 = vmatprep.subr.mxu0 0.0
    %188 = vmatpush1.msra.mxu0 0.0
    %189 = vmatprep.subr.mxu0 0.0
    %190 = vmatpush1.msra.mxu0 0.0
    %191 = vmatprep.subr.mxu0 0.0
    %192 = vmatpush1.msra.mxu0 0.0
    %193 = vmatprep.subr.mxu0 0.0
    %194 = vmatpush1.msra.mxu0 0.0
    %195 = vmatprep.subr.mxu0 0.0
    %196 = vmatpush1.msra.mxu0 0.0
    %197 = vmatprep.subr.mxu0 0.0
    %198 = vmatpush1.msra.mxu0 0.0
    %199 = vmatprep.subr.mxu0 0.0
    %200 = vmatpush1.msra.mxu0 0.0
    %201 = vmatprep.subr.mxu0 0.0
    %202 = vmatpush1.msra.mxu0 0.0
    %203 = vmatprep.subr.mxu0 0.0
    %204 = vmatpush1.msra.mxu0 0.0
    %205 = vmatprep.subr.mxu0 0.0
    %206 = vmatpush1.msra.mxu0 0.0
    %207 = vmatprep.subr.mxu0 0.0
    %208 = vmatpush1.msra.mxu0 0.0
    %209 = vmatprep.subr.mxu0 0.0
    %210 = vmatpush1.msra.mxu0 0.0
    %211 = vmatprep.subr.mxu0 0.0
    %212 = vmatpush1.msra.mxu0 0.0
    %213 = vmatprep.subr.mxu0 0.0
    %214 = vmatpush1.msra.mxu0 0.0
    %215 = vmatprep.subr.mxu0 0.0
    %216 = vmatpush1.msra.mxu0 0.0
    %217 = vmatprep.subr.mxu0 0.0
    %218 = vmatpush1.msra.mxu0 0.0
    %219 = vmatprep.subr.mxu0 0.0
    %220 = vmatpush1.msra.mxu0 0.0
    %221 = vmatprep.subr.mxu0 0.0
    %222 = vmatpush1.msra.mxu0 0.0
    %223 = vmatprep.subr.mxu0 0.0
    %224 = vmatpush1.msra.mxu0 0.0
    %225 = vmatprep.subr.mxu0 0.0
    %226 = vmatpush1.msra.mxu0 0.0
    %227 = vmatprep.subr.mxu0 0.0
    %228 = vmatpush1.msra.mxu0 0.0
    %229 = vmatprep.subr.mxu0 0.0
    %230 = vmatpush1.msra.mxu0 0.0
    %231 = vmatprep.subr.mxu0 0.0
    %232 = vmatpush1.msra.mxu0 0.0
    %233 = vmatprep.subr.mxu0 0.0
    %234 = vmatpush1.msra.mxu0 0.0
    %235 = vmatprep.subr.mxu0 0.0
    %236 = vmatpush1.msra.mxu0 0.0
    %237 = vmatprep.mubr.f32.mxu0 0.0
    %v238 = vand.u32 %v86, 4294901760
    %239 = vmatmul.mubr.f32.gmra.mrb[0].mxu0 %v238
    %v240 = vpop.f32.mrb[0].mxu0
    %v241 = vadd.f32 %v160, %v240
    %v242 = vpop.f32.mrb[0].mxu0
    %243 = vmatprep.mubr.f32.mxu0 0.0
    %v244 = vand.u32 %v87, 4294901760
    %245 = vmatmul.mubr.f32.gmra.mrb[0].mxu0 %v244
    %v246 = vpop.f32.mrb[0].mxu0
    %v247 = vadd.f32 %v170, %v246
    %v248 = vpop.f32.mrb[0].mxu0
    %249 = vdwg.mxu0
    %250 = vmatprep.subr.mxu0 0.0
    %251 = vmatpush1.msra.mxu0 0.0
    %252 = vmatprep.subr.mxu0 0.0
    %253 = vmatpush1.msra.mxu0 0.0
    %254 = vmatprep.subr.mxu0 0.0
    %255 = vmatpush1.msra.mxu0 0.0
    %256 = vmatprep.subr.mxu0 0.0
    %257 = vmatpush1.msra.mxu0 0.0
    %258 = vmatprep.subr.mxu0 0.0
    %259 = vmatpush1.msra.mxu0 0.0
    %260 = vmatprep.subr.mxu0 0.0
    %261 = vmatpush1.msra.mxu0 0.0
    %262 = vmatprep.subr.mxu0 0.0
    %263 = vmatpush1.msra.mxu0 0.0
    %264 = vmatprep.subr.mxu0 0.0
    %265 = vmatpush1.msra.mxu0 0.0
    %266 = vmatprep.subr.mxu0 0.0
    %267 = vmatpush1.msra.mxu0 0.0
    %268 = vmatprep.subr.mxu0 0.0
    %269 = vmatpush1.msra.mxu0 0.0
    %270 = vmatprep.subr.mxu0 0.0
    %271 = vmatpush1.msra.mxu0 0.0
    %272 = vmatprep.subr.mxu0 0.0
    %273 = vmatpush1.msra.mxu0 0.0
    %274 = vmatprep.subr.mxu0 0.0
    %275 = vmatpush1.msra.mxu0 0.0
    %276 = vmatprep.subr.mxu0 0.0
    %277 = vmatpush1.msra.mxu0 0.0
    %278 = vmatprep.subr.mxu0 0.0
    %279 = vmatpush1.msra.mxu0 0.0
    %280 = vmatprep.subr.mxu0 0.0
    %281 = vmatpush1.msra.mxu0 0.0
    %282 = vmatprep.subr.mxu0 0.0
    %283 = vmatpush1.msra.mxu0 0.0
    %284 = vmatprep.subr.mxu0 0.0
    %285 = vmatpush1.msra.mxu0 0.0
    %286 = vmatprep.subr.mxu0 0.0
    %287 = vmatpush1.msra.mxu0 0.0
    %288 = vmatprep.subr.mxu0 0.0
    %289 = vmatpush1.msra.mxu0 0.0
    %290 = vmatprep.subr.mxu0 0.0
    %291 = vmatpush1.msra.mxu0 0.0
    %292 = vmatprep.subr.mxu0 0.0
    %293 = vmatpush1.msra.mxu0 0.0
    %294 = vmatprep.subr.mxu0 0.0
    %295 = vmatpush1.msra.mxu0 0.0
    %296 = vmatprep.subr.mxu0 0.0
    %297 = vmatpush1.msra.mxu0 0.0
    %298 = vmatprep.subr.mxu0 0.0
    %299 = vmatpush1.msra.mxu0 0.0
    %300 = vmatprep.subr.mxu0 0.0
    %301 = vmatpush1.msra.mxu0 0.0
    %302 = vmatprep.subr.mxu0 0.0
    %303 = vmatpush1.msra.mxu0 0.0
    %304 = vmatprep.subr.mxu0 0.0
    %305 = vmatpush1.msra.mxu0 0.0
    %306 = vmatprep.subr.mxu0 0.0
    %307 = vmatpush1.msra.mxu0 0.0
    %308 = vmatprep.subr.mxu0 0.0
    %309 = vmatpush1.msra.mxu0 0.0
    %310 = vmatprep.subr.mxu0 0.0
    %311 = vmatpush1.msra.mxu0 0.0
    %312 = vmatprep.subr.mxu0 0.0
    %313 = vmatpush1.msra.mxu0 0.0
    %314 = vmatprep.mubr.f32.mxu0 0.0
    %v315 = vand.u32 %v86, 4294901760
    %v316 = vsub.f32 %v86, %v315
    %317 = vmatmul.mubr.f32.gmra.mrb[0].mxu0 %v316
    %v318 = vpop.f32.mrb[0].mxu0
    %v319 = vadd.f32 %v241, %v318
    %v320 = vpop.f32.mrb[0].mxu0
    %321 = vmatprep.mubr.f32.mxu0 0.0
    %v322 = vand.u32 %v87, 4294901760
    %v323 = vsub.f32 %v87, %v322
    %324 = vmatmul.mubr.f32.gmra.mrb[0].mxu0 %v323
    %v325 = vpop.f32.mrb[0].mxu0
    %v326 = vadd.f32 %v247, %v325
    %v327 = vpop.f32.mrb[0].mxu0
    %328 = vdwg.mxu0
    %329 = vmatprep.subr.mxu0 0.0
    %330 = vmatpush1.msra.mxu0 1.0
    %331 = vmatprep.subr.mxu0 0.0
    %332 = vmatpush1.msra.mxu0 1.0
    %333 = vmatprep.subr.mxu0 0.0
    %334 = vmatpush1.msra.mxu0 1.0
    %335 = vmatprep.subr.mxu0 0.0
    %336 = vmatpush1.msra.mxu0 1.0
    %337 = vmatprep.subr.mxu0 0.0
    %338 = vmatpush1.msra.mxu0 1.0
    %339 = vmatprep.subr.mxu0 0.0
    %340 = vmatpush1.msra.mxu0 1.0
    %341 = vmatprep.subr.mxu0 0.0
    %342 = vmatpush1.msra.mxu0 1.0
    %343 = vmatprep.subr.mxu0 0.0
    %344 = vmatpush1.msra.mxu0 1.0
    %345 = vmatprep.subr.mxu0 0.0
    %346 = vmatpush1.msra.mxu0 1.0
    %347 = vmatprep.subr.mxu0 0.0
    %348 = vmatpush1.msra.mxu0 1.0
    %349 = vmatprep.subr.mxu0 0.0
    %350 = vmatpush1.msra.mxu0 1.0
    %351 = vmatprep.subr.mxu0 0.0
    %352 = vmatpush1.msra.mxu0 1.0
    %353 = vmatprep.subr.mxu0 0.0
    %354 = vmatpush1.msra.mxu0 1.0
    %355 = vmatprep.subr.mxu0 0.0
    %356 = vmatpush1.msra.mxu0 1.0
    %357 = vmatprep.subr.mxu0 0.0
    %358 = vmatpush1.msra.mxu0 1.0
    %359 = vmatprep.subr.mxu0 0.0
    %360 = vmatpush1.msra.mxu0 1.0
    %361 = vmatprep.subr.mxu0 0.0
    %362 = vmatpush1.msra.mxu0 0.0
    %363 = vmatprep.subr.mxu0 0.0
    %364 = vmatpush1.msra.mxu0 0.0
    %365 = vmatprep.subr.mxu0 0.0
    %366 = vmatpush1.msra.mxu0 0.0
    %367 = vmatprep.subr.mxu0 0.0
    %368 = vmatpush1.msra.mxu0 0.0
    %369 = vmatprep.subr.mxu0 0.0
    %370 = vmatpush1.msra.mxu0 0.0
    %371 = vmatprep.subr.mxu0 0.0
    %372 = vmatpush1.msra.mxu0 0.0
    %373 = vmatprep.subr.mxu0 0.0
    %374 = vmatpush1.msra.mxu0 0.0
    %375 = vmatprep.subr.mxu0 0.0
    %376 = vmatpush1.msra.mxu0 0.0
    %377 = vmatprep.subr.mxu0 0.0
    %378 = vmatpush1.msra.mxu0 0.0
    %379 = vmatprep.subr.mxu0 0.0
    %380 = vmatpush1.msra.mxu0 0.0
    %381 = vmatprep.subr.mxu0 0.0
    %382 = vmatpush1.msra.mxu0 0.0
    %383 = vmatprep.subr.mxu0 0.0
    %384 = vmatpush1.msra.mxu0 0.0
    %385 = vmatprep.subr.mxu0 0.0
    %386 = vmatpush1.msra.mxu0 0.0
    %387 = vmatprep.subr.mxu0 0.0
    %388 = vmatpush1.msra.mxu0 0.0
    %389 = vmatprep.subr.mxu0 0.0
    %390 = vmatpush1.msra.mxu0 0.0
    %391 = vmatprep.subr.mxu0 0.0
    %392 = vmatpush1.msra.mxu0 0.0
    %393 = vmatprep.mubr.f32.mxu0 0.0
    %v394 = vand.u32 %v86, 4294901760
    %v395 = vsub.f32 %v86, %v394
    %v396 = vand.u32 %v395, 4294901760
    %397 = vmatmul.mubr.f32.gmra.mrb[0].mxu0 %v396
    %v398 = vpop.f32.mrb[0].mxu0
    %v399 = vadd.f32 %v319, %v398
    %v400 = vpop.f32.mrb[0].mxu0
    %401 = vmatprep.mubr.f32.mxu0 0.0
    %v402 = vand.u32 %v87, 4294901760
    %v403 = vsub.f32 %v87, %v402
    %v404 = vand.u32 %v403, 4294901760
    %405 = vmatmul.mubr.f32.gmra.mrb[0].mxu0 %v404
    %v406 = vpop.f32.mrb[0].mxu0
    %v407 = vadd.f32 %v326, %v406
    %v408 = vpop.f32.mrb[0].mxu0
    %409 = vdwg.mxu0
    %410 = vmatprep.subr.mxu0 0.0
    %411 = vmatpush1.msra.mxu0 0.0
    %412 = vmatprep.subr.mxu0 0.0
    %413 = vmatpush1.msra.mxu0 0.0
    %414 = vmatprep.subr.mxu0 0.0
    %415 = vmatpush1.msra.mxu0 0.0
    %416 = vmatprep.subr.mxu0 0.0
    %417 = vmatpush1.msra.mxu0 0.0
    %418 = vmatprep.subr.mxu0 0.0
    %419 = vmatpush1.msra.mxu0 0.0
    %420 = vmatprep.subr.mxu0 0.0
    %421 = vmatpush1.msra.mxu0 0.0
    %422 = vmatprep.subr.mxu0 0.0
    %423 = vmatpush1.msra.mxu0 0.0
    %424 = vmatprep.subr.mxu0 0.0
    %425 = vmatpush1.msra.mxu0 0.0
    %426 = vmatprep.subr.mxu0 0.0
    %427 = vmatpush1.msra.mxu0 0.0
    %428 = vmatprep.subr.mxu0 0.0
    %429 = vmatpush1.msra.mxu0 0.0
    %430 = vmatprep.subr.mxu0 0.0
    %431 = vmatpush1.msra.mxu0 0.0
    %432 = vmatprep.subr.mxu0 0.0
    %433 = vmatpush1.msra.mxu0 0.0
    %434 = vmatprep.subr.mxu0 0.0
    %435 = vmatpush1.msra.mxu0 0.0
    %436 = vmatprep.subr.mxu0 0.0
    %437 = vmatpush1.msra.mxu0 0.0
    %438 = vmatprep.subr.mxu0 0.0
    %439 = vmatpush1.msra.mxu0 0.0
    %440 = vmatprep.subr.mxu0 0.0
    %441 = vmatpush1.msra.mxu0 0.0
    %442 = vmatprep.subr.mxu0 0.0
    %443 = vmatpush1.msra.mxu0 0.0
    %444 = vmatprep.subr.mxu0 0.0
    %445 = vmatpush1.msra.mxu0 0.0
    %446 = vmatprep.subr.mxu0 0.0
    %447 = vmatpush1.msra.mxu0 0.0
    %448 = vmatprep.subr.mxu0 0.0
    %449 = vmatpush1.msra.mxu0 0.0
    %450 = vmatprep.subr.mxu0 0.0
    %451 = vmatpush1.msra.mxu0 0.0
    %452 = vmatprep.subr.mxu0 0.0
    %453 = vmatpush1.msra.mxu0 0.0
    %454 = vmatprep.subr.mxu0 0.0
    %455 = vmatpush1.msra.mxu0 0.0
    %456 = vmatprep.subr.mxu0 0.0
    %457 = vmatpush1.msra.mxu0 0.0
    %458 = vmatprep.subr.mxu0 0.0
    %459 = vmatpush1.msra.mxu0 0.0
    %460 = vmatprep.subr.mxu0 0.0
    %461 = vmatpush1.msra.mxu0 0.0
    %462 = vmatprep.subr.mxu0 0.0
    %463 = vmatpush1.msra.mxu0 0.0
    %464 = vmatprep.subr.mxu0 0.0
    %465 = vmatpush1.msra.mxu0 0.0
    %466 = vmatprep.subr.mxu0 0.0
    %467 = vmatpush1.msra.mxu0 0.0
    %468 = vmatprep.subr.mxu0 0.0
    %469 = vmatpush1.msra.mxu0 0.0
    %470 = vmatprep.subr.mxu0 0.0
    %471 = vmatpush1.msra.mxu0 0.0
    %472 = vmatprep.subr.mxu0 0.0
    %473 = vmatpush1.msra.mxu0 0.0
    %474 = vmatprep.mubr.f32.mxu0 0.0
    %v475 = vand.u32 %v86, 4294901760
    %476 = vmatmul.mubr.f32.gmra.mrb[0].mxu0 %v475
    %v477 = vpop.f32.mrb[0].mxu0
    %v478 = vadd.f32 %v399, %v477
    %v479 = vpop.f32.mrb[0].mxu0
    %480 = vmatprep.mubr.f32.mxu0 0.0
    %v481 = vand.u32 %v87, 4294901760
    %482 = vmatmul.mubr.f32.gmra.mrb[0].mxu0 %v481
    %v483 = vpop.f32.mrb[0].mxu0
    %v484 = vadd.f32 %v407, %v483
    %v485 = vpop.f32.mrb[0].mxu0
    %486 = vdwg.mxu0
    %487 = vmatprep.subr.mxu0 0.0
    %488 = vmatpush1.msra.mxu0 1.0
    %489 = vmatprep.subr.mxu0 0.0
    %490 = vmatpush1.msra.mxu0 1.0
    %491 = vmatprep.subr.mxu0 0.0
    %492 = vmatpush1.msra.mxu0 1.0
    %493 = vmatprep.subr.mxu0 0.0
    %494 = vmatpush1.msra.mxu0 1.0
    %495 = vmatprep.subr.mxu0 0.0
    %496 = vmatpush1.msra.mxu0 1.0
    %497 = vmatprep.subr.mxu0 0.0
    %498 = vmatpush1.msra.mxu0 1.0
    %499 = vmatprep.subr.mxu0 0.0
    %500 = vmatpush1.msra.mxu0 1.0
    %501 = vmatprep.subr.mxu0 0.0
    %502 = vmatpush1.msra.mxu0 1.0
    %503 = vmatprep.subr.mxu0 0.0
    %504 = vmatpush1.msra.mxu0 1.0
    %505 = vmatprep.subr.mxu0 0.0
    %506 = vmatpush1.msra.mxu0 1.0
    %507 = vmatprep.subr.mxu0 0.0
    %508 = vmatpush1.msra.mxu0 1.0
    %509 = vmatprep.subr.mxu0 0.0
    %510 = vmatpush1.msra.mxu0 1.0
    %511 = vmatprep.subr.mxu0 0.0
    %512 = vmatpush1.msra.mxu0 1.0
    %513 = vmatprep.subr.mxu0 0.0
    %514 = vmatpush1.msra.mxu0 1.0
    %515 = vmatprep.subr.mxu0 0.0
    %516 = vmatpush1.msra.mxu0 1.0
    %517 = vmatprep.subr.mxu0 0.0
    %518 = vmatpush1.msra.mxu0 1.0
    %519 = vmatprep.subr.mxu0 0.0
    %520 = vmatpush1.msra.mxu0 0.0
    %521 = vmatprep.subr.mxu0 0.0
    %522 = vmatpush1.msra.mxu0 0.0
    %523 = vmatprep.subr.mxu0 0.0
    %524 = vmatpush1.msra.mxu0 0.0
    %525 = vmatprep.subr.mxu0 0.0
    %526 = vmatpush1.msra.mxu0 0.0
    %527 = vmatprep.subr.mxu0 0.0
    %528 = vmatpush1.msra.mxu0 0.0
    %529 = vmatprep.subr.mxu0 0.0
    %530 = vmatpush1.msra.mxu0 0.0
    %531 = vmatprep.subr.mxu0 0.0
    %532 = vmatpush1.msra.mxu0 0.0
    %533 = vmatprep.subr.mxu0 0.0
    %534 = vmatpush1.msra.mxu0 0.0
    %535 = vmatprep.subr.mxu0 0.0
    %536 = vmatpush1.msra.mxu0 0.0
    %537 = vmatprep.subr.mxu0 0.0
    %538 = vmatpush1.msra.mxu0 0.0
    %539 = vmatprep.subr.mxu0 0.0
    %540 = vmatpush1.msra.mxu0 0.0
    %541 = vmatprep.subr.mxu0 0.0
    %542 = vmatpush1.msra.mxu0 0.0
    %543 = vmatprep.subr.mxu0 0.0
    %544 = vmatpush1.msra.mxu0 0.0
    %545 = vmatprep.subr.mxu0 0.0
    %546 = vmatpush1.msra.mxu0 0.0
    %547 = vmatprep.subr.mxu0 0.0
    %548 = vmatpush1.msra.mxu0 0.0
    %549 = vmatprep.subr.mxu0 0.0
    %550 = vmatpush1.msra.mxu0 0.0
    %551 = vmatprep.mubr.f32.mxu0 0.0
    %v552 = vand.u32 %v86, 4294901760
    %553 = vmatmul.mubr.f32.gmra.mrb[0].mxu0 %v552
    %v554 = vpop.f32.mrb[0].mxu0
    %v555 = vadd.f32 %v478, %v554
    %v556 = vpop.f32.mrb[0].mxu0
    %557 = vmatprep.mubr.f32.mxu0 0.0
    %v558 = vand.u32 %v87, 4294901760
    %559 = vmatmul.mubr.f32.gmra.mrb[0].mxu0 %v558
    %v560 = vpop.f32.mrb[0].mxu0
    %v561 = vadd.f32 %v484, %v560
    %v562 = vpop.f32.mrb[0].mxu0
    %563 = vdwg.mxu0
    %v564 = vmax.f32 %v555, 1e-12
    %v565 = vmax.f32 %v561, 1e-12
    %v566 = vmul.f32 %v82, %v82
    %v567 = vmul.f32 %v83, %v83
    %568 = vmatprep.subr.mxu0 0.0
    %569 = vmatpush1.msra.mxu0 1.0
    %570 = vmatprep.subr.mxu0 0.0
    %571 = vmatpush1.msra.mxu0 1.0
    %572 = vmatprep.subr.mxu0 0.0
    %573 = vmatpush1.msra.mxu0 1.0
    %574 = vmatprep.subr.mxu0 0.0
    %575 = vmatpush1.msra.mxu0 1.0
    %576 = vmatprep.subr.mxu0 0.0
    %577 = vmatpush1.msra.mxu0 1.0
    %578 = vmatprep.subr.mxu0 0.0
    %579 = vmatpush1.msra.mxu0 1.0
    %580 = vmatprep.subr.mxu0 0.0
    %581 = vmatpush1.msra.mxu0 1.0
    %582 = vmatprep.subr.mxu0 0.0
    %583 = vmatpush1.msra.mxu0 1.0
    %584 = vmatprep.subr.mxu0 0.0
    %585 = vmatpush1.msra.mxu0 1.0
    %586 = vmatprep.subr.mxu0 0.0
    %587 = vmatpush1.msra.mxu0 1.0
    %588 = vmatprep.subr.mxu0 0.0
    %589 = vmatpush1.msra.mxu0 1.0
    %590 = vmatprep.subr.mxu0 0.0
    %591 = vmatpush1.msra.mxu0 1.0
    %592 = vmatprep.subr.mxu0 0.0
    %593 = vmatpush1.msra.mxu0 1.0
    %594 = vmatprep.subr.mxu0 0.0
    %595 = vmatpush1.msra.mxu0 1.0
    %596 = vmatprep.subr.mxu0 0.0
    %597 = vmatpush1.msra.mxu0 1.0
    %598 = vmatprep.subr.mxu0 0.0
    %599 = vmatpush1.msra.mxu0 1.0
    %600 = vmatprep.subr.mxu0 0.0
    %601 = vmatpush1.msra.mxu0 0.0
    %602 = vmatprep.subr.mxu0 0.0
    %603 = vmatpush1.msra.mxu0 0.0
    %604 = vmatprep.subr.mxu0 0.0
    %605 = vmatpush1.msra.mxu0 0.0
    %606 = vmatprep.subr.mxu0 0.0
    %607 = vmatpush1.msra.mxu0 0.0
    %608 = vmatprep.subr.mxu0 0.0
    %609 = vmatpush1.msra.mxu0 0.0
    %610 = vmatprep.subr.mxu0 0.0
    %611 = vmatpush1.msra.mxu0 0.0
    %612 = vmatprep.subr.mxu0 0.0
    %613 = vmatpush1.msra.mxu0 0.0
    %614 = vmatprep.subr.mxu0 0.0
    %615 = vmatpush1.msra.mxu0 0.0
    %616 = vmatprep.subr.mxu0 0.0
    %617 = vmatpush1.msra.mxu0 0.0
    %618 = vmatprep.subr.mxu0 0.0
    %619 = vmatpush1.msra.mxu0 0.0
    %620 = vmatprep.subr.mxu0 0.0
    %621 = vmatpush1.msra.mxu0 0.0
    %622 = vmatprep.subr.mxu0 0.0
    %623 = vmatpush1.msra.mxu0 0.0
    %624 = vmatprep.subr.mxu0 0.0
    %625 = vmatpush1.msra.mxu0 0.0
    %626 = vmatprep.subr.mxu0 0.0
    %627 = vmatpush1.msra.mxu0 0.0
    %628 = vmatprep.subr.mxu0 0.0
    %629 = vmatpush1.msra.mxu0 0.0
    %630 = vmatprep.subr.mxu0 0.0
    %631 = vmatpush1.msra.mxu0 0.0
    %632 = vmatprep.mubr.f32.mxu0 0.0
    %v633 = vand.u32 %v566, 4294901760
    %v634 = vsub.f32 %v566, %v633
    %v635 = vand.u32 %v634, 4294901760
    %v636 = vsub.f32 %v634, %v635
    %v637 = vand.u32 %v636, 4294901760
    %638 = vmatmul.mubr.f32.gmra.mrb[0].mxu0 %v637
    %v639 = vpop.f32.mrb[0].mxu0
    %v640 = vadd.f32 0.0, %v639
    %v641 = vpop.f32.mrb[0].mxu0
    %642 = vmatprep.mubr.f32.mxu0 0.0
    %v643 = vand.u32 %v567, 4294901760
    %v644 = vsub.f32 %v567, %v643
    %v645 = vand.u32 %v644, 4294901760
    %v646 = vsub.f32 %v644, %v645
    %v647 = vand.u32 %v646, 4294901760
    %648 = vmatmul.mubr.f32.gmra.mrb[0].mxu0 %v647
    %v649 = vpop.f32.mrb[0].mxu0
    %v650 = vadd.f32 0.0, %v649
    %v651 = vpop.f32.mrb[0].mxu0
    %652 = vdwg.mxu0
    %653 = vmatprep.subr.mxu0 0.0
    %654 = vmatpush1.msra.mxu0 0.0
    %655 = vmatprep.subr.mxu0 0.0
    %656 = vmatpush1.msra.mxu0 0.0
    %657 = vmatprep.subr.mxu0 0.0
    %658 = vmatpush1.msra.mxu0 0.0
    %659 = vmatprep.subr.mxu0 0.0
    %660 = vmatpush1.msra.mxu0 0.0
    %661 = vmatprep.subr.mxu0 0.0
    %662 = vmatpush1.msra.mxu0 0.0
    %663 = vmatprep.subr.mxu0 0.0
    %664 = vmatpush1.msra.mxu0 0.0
    %665 = vmatprep.subr.mxu0 0.0
    %666 = vmatpush1.msra.mxu0 0.0
    %667 = vmatprep.subr.mxu0 0.0
    %668 = vmatpush1.msra.mxu0 0.0
    %669 = vmatprep.subr.mxu0 0.0
    %670 = vmatpush1.msra.mxu0 0.0
    %671 = vmatprep.subr.mxu0 0.0
    %672 = vmatpush1.msra.mxu0 0.0
    %673 = vmatprep.subr.mxu0 0.0
    %674 = vmatpush1.msra.mxu0 0.0
    %675 = vmatprep.subr.mxu0 0.0
    %676 = vmatpush1.msra.mxu0 0.0
    %677 = vmatprep.subr.mxu0 0.0
    %678 = vmatpush1.msra.mxu0 0.0
    %679 = vmatprep.subr.mxu0 0.0
    %680 = vmatpush1.msra.mxu0 0.0
    %681 = vmatprep.subr.mxu0 0.0
    %682 = vmatpush1.msra.mxu0 0.0
    %683 = vmatprep.subr.mxu0 0.0
    %684 = vmatpush1.msra.mxu0 0.0
    %685 = vmatprep.subr.mxu0 0.0
    %686 = vmatpush1.msra.mxu0 0.0
    %687 = vmatprep.subr.mxu0 0.0
    %688 = vmatpush1.msra.mxu0 0.0
    %689 = vmatprep.subr.mxu0 0.0
    %690 = vmatpush1.msra.mxu0 0.0
    %691 = vmatprep.subr.mxu0 0.0
    %692 = vmatpush1.msra.mxu0 0.0
    %693 = vmatprep.subr.mxu0 0.0
    %694 = vmatpush1.msra.mxu0 0.0
    %695 = vmatprep.subr.mxu0 0.0
    %696 = vmatpush1.msra.mxu0 0.0
    %697 = vmatprep.subr.mxu0 0.0
    %698 = vmatpush1.msra.mxu0 0.0
    %699 = vmatprep.subr.mxu0 0.0
    %700 = vmatpush1.msra.mxu0 0.0
    %701 = vmatprep.subr.mxu0 0.0
    %702 = vmatpush1.msra.mxu0 0.0
    %703 = vmatprep.subr.mxu0 0.0
    %704 = vmatpush1.msra.mxu0 0.0
    %705 = vmatprep.subr.mxu0 0.0
    %706 = vmatpush1.msra.mxu0 0.0
    %707 = vmatprep.subr.mxu0 0.0
    %708 = vmatpush1.msra.mxu0 0.0
    %709 = vmatprep.subr.mxu0 0.0
    %710 = vmatpush1.msra.mxu0 0.0
    %711 = vmatprep.subr.mxu0 0.0
    %712 = vmatpush1.msra.mxu0 0.0
    %713 = vmatprep.subr.mxu0 0.0
    %714 = vmatpush1.msra.mxu0 0.0
    %715 = vmatprep.subr.mxu0 0.0
    %716 = vmatpush1.msra.mxu0 0.0
    %717 = vmatprep.mubr.f32.mxu0 0.0
    %v718 = vand.u32 %v566, 4294901760
    %719 = vmatmul.mubr.f32.gmra.mrb[0].mxu0 %v718
    %v720 = vpop.f32.mrb[0].mxu0
    %v721 = vadd.f32 %v640, %v720
    %v722 = vpop.f32.mrb[0].mxu0
    %723 = vmatprep.mubr.f32.mxu0 0.0
    %v724 = vand.u32 %v567, 4294901760
    %725 = vmatmul.mubr.f32.gmra.mrb[0].mxu0 %v724
    %v726 = vpop.f32.mrb[0].mxu0
    %v727 = vadd.f32 %v650, %v726
    %v728 = vpop.f32.mrb[0].mxu0
    %729 = vdwg.mxu0
    %730 = vmatprep.subr.mxu0 0.0
    %731 = vmatpush1.msra.mxu0 0.0
    %732 = vmatprep.subr.mxu0 0.0
    %733 = vmatpush1.msra.mxu0 0.0
    %734 = vmatprep.subr.mxu0 0.0
    %735 = vmatpush1.msra.mxu0 0.0
    %736 = vmatprep.subr.mxu0 0.0
    %737 = vmatpush1.msra.mxu0 0.0
    %738 = vmatprep.subr.mxu0 0.0
    %739 = vmatpush1.msra.mxu0 0.0
    %740 = vmatprep.subr.mxu0 0.0
    %741 = vmatpush1.msra.mxu0 0.0
    %742 = vmatprep.subr.mxu0 0.0
    %743 = vmatpush1.msra.mxu0 0.0
    %744 = vmatprep.subr.mxu0 0.0
    %745 = vmatpush1.msra.mxu0 0.0
    %746 = vmatprep.subr.mxu0 0.0
    %747 = vmatpush1.msra.mxu0 0.0
    %748 = vmatprep.subr.mxu0 0.0
    %749 = vmatpush1.msra.mxu0 0.0
    %750 = vmatprep.subr.mxu0 0.0
    %751 = vmatpush1.msra.mxu0 0.0
    %752 = vmatprep.subr.mxu0 0.0
    %753 = vmatpush1.msra.mxu0 0.0
    %754 = vmatprep.subr.mxu0 0.0
    %755 = vmatpush1.msra.mxu0 0.0
    %756 = vmatprep.subr.mxu0 0.0
    %757 = vmatpush1.msra.mxu0 0.0
    %758 = vmatprep.subr.mxu0 0.0
    %759 = vmatpush1.msra.mxu0 0.0
    %760 = vmatprep.subr.mxu0 0.0
    %761 = vmatpush1.msra.mxu0 0.0
    %762 = vmatprep.subr.mxu0 0.0
    %763 = vmatpush1.msra.mxu0 0.0
    %764 = vmatprep.subr.mxu0 0.0
    %765 = vmatpush1.msra.mxu0 0.0
    %766 = vmatprep.subr.mxu0 0.0
    %767 = vmatpush1.msra.mxu0 0.0
    %768 = vmatprep.subr.mxu0 0.0
    %769 = vmatpush1.msra.mxu0 0.0
    %770 = vmatprep.subr.mxu0 0.0
    %771 = vmatpush1.msra.mxu0 0.0
    %772 = vmatprep.subr.mxu0 0.0
    %773 = vmatpush1.msra.mxu0 0.0
    %774 = vmatprep.subr.mxu0 0.0
    %775 = vmatpush1.msra.mxu0 0.0
    %776 = vmatprep.subr.mxu0 0.0
    %777 = vmatpush1.msra.mxu0 0.0
    %778 = vmatprep.subr.mxu0 0.0
    %779 = vmatpush1.msra.mxu0 0.0
    %780 = vmatprep.subr.mxu0 0.0
    %781 = vmatpush1.msra.mxu0 0.0
    %782 = vmatprep.subr.mxu0 0.0
    %783 = vmatpush1.msra.mxu0 0.0
    %784 = vmatprep.subr.mxu0 0.0
    %785 = vmatpush1.msra.mxu0 0.0
    %786 = vmatprep.subr.mxu0 0.0
    %787 = vmatpush1.msra.mxu0 0.0
    %788 = vmatprep.subr.mxu0 0.0
    %789 = vmatpush1.msra.mxu0 0.0
    %790 = vmatprep.subr.mxu0 0.0
    %791 = vmatpush1.msra.mxu0 0.0
    %792 = vmatprep.subr.mxu0 0.0
    %793 = vmatpush1.msra.mxu0 0.0
    %794 = vmatprep.mubr.f32.mxu0 0.0
    %v795 = vand.u32 %v566, 4294901760
    %v796 = vsub.f32 %v566, %v795
    %797 = vmatmul.mubr.f32.gmra.mrb[0].mxu0 %v796
    %v798 = vpop.f32.mrb[0].mxu0
    %v799 = vadd.f32 %v721, %v798
    %v800 = vpop.f32.mrb[0].mxu0
    %801 = vmatprep.mubr.f32.mxu0 0.0
    %v802 = vand.u32 %v567, 4294901760
    %v803 = vsub.f32 %v567, %v802
    %804 = vmatmul.mubr.f32.gmra.mrb[0].mxu0 %v803
    %v805 = vpop.f32.mrb[0].mxu0
    %v806 = vadd.f32 %v727, %v805
    %v807 = vpop.f32.mrb[0].mxu0
    %808 = vdwg.mxu0
    %809 = vmatprep.subr.mxu0 0.0
    %810 = vmatpush1.msra.mxu0 1.0
    %811 = vmatprep.subr.mxu0 0.0
    %812 = vmatpush1.msra.mxu0 1.0
    %813 = vmatprep.subr.mxu0 0.0
    %814 = vmatpush1.msra.mxu0 1.0
    %815 = vmatprep.subr.mxu0 0.0
    %816 = vmatpush1.msra.mxu0 1.0
    %817 = vmatprep.subr.mxu0 0.0
    %818 = vmatpush1.msra.mxu0 1.0
    %819 = vmatprep.subr.mxu0 0.0
    %820 = vmatpush1.msra.mxu0 1.0
    %821 = vmatprep.subr.mxu0 0.0
    %822 = vmatpush1.msra.mxu0 1.0
    %823 = vmatprep.subr.mxu0 0.0
    %824 = vmatpush1.msra.mxu0 1.0
    %825 = vmatprep.subr.mxu0 0.0
    %826 = vmatpush1.msra.mxu0 1.0
    %827 = vmatprep.subr.mxu0 0.0
    %828 = vmatpush1.msra.mxu0 1.0
    %829 = vmatprep.subr.mxu0 0.0
    %830 = vmatpush1.msra.mxu0 1.0
    %831 = vmatprep.subr.mxu0 0.0
    %832 = vmatpush1.msra.mxu0 1.0
    %833 = vmatprep.subr.mxu0 0.0
    %834 = vmatpush1.msra.mxu0 1.0
    %835 = vmatprep.subr.mxu0 0.0
    %836 = vmatpush1.msra.mxu0 1.0
    %837 = vmatprep.subr.mxu0 0.0
    %838 = vmatpush1.msra.mxu0 1.0
    %839 = vmatprep.subr.mxu0 0.0
    %840 = vmatpush1.msra.mxu0 1.0
    %841 = vmatprep.subr.mxu0 0.0
    %842 = vmatpush1.msra.mxu0 0.0
    %843 = vmatprep.subr.mxu0 0.0
    %844 = vmatpush1.msra.mxu0 0.0
    %845 = vmatprep.subr.mxu0 0.0
    %846 = vmatpush1.msra.mxu0 0.0
    %847 = vmatprep.subr.mxu0 0.0
    %848 = vmatpush1.msra.mxu0 0.0
    %849 = vmatprep.subr.mxu0 0.0
    %850 = vmatpush1.msra.mxu0 0.0
    %851 = vmatprep.subr.mxu0 0.0
    %852 = vmatpush1.msra.mxu0 0.0
    %853 = vmatprep.subr.mxu0 0.0
    %854 = vmatpush1.msra.mxu0 0.0
    %855 = vmatprep.subr.mxu0 0.0
    %856 = vmatpush1.msra.mxu0 0.0
    %857 = vmatprep.subr.mxu0 0.0
    %858 = vmatpush1.msra.mxu0 0.0
    %859 = vmatprep.subr.mxu0 0.0
    %860 = vmatpush1.msra.mxu0 0.0
    %861 = vmatprep.subr.mxu0 0.0
    %862 = vmatpush1.msra.mxu0 0.0
    %863 = vmatprep.subr.mxu0 0.0
    %864 = vmatpush1.msra.mxu0 0.0
    %865 = vmatprep.subr.mxu0 0.0
    %866 = vmatpush1.msra.mxu0 0.0
    %867 = vmatprep.subr.mxu0 0.0
    %868 = vmatpush1.msra.mxu0 0.0
    %869 = vmatprep.subr.mxu0 0.0
    %870 = vmatpush1.msra.mxu0 0.0
    %871 = vmatprep.subr.mxu0 0.0
    %872 = vmatpush1.msra.mxu0 0.0
    %873 = vmatprep.mubr.f32.mxu0 0.0
    %v874 = vand.u32 %v566, 4294901760
    %v875 = vsub.f32 %v566, %v874
    %v876 = vand.u32 %v875, 4294901760
    %877 = vmatmul.mubr.f32.gmra.mrb[0].mxu0 %v876
    %v878 = vpop.f32.mrb[0].mxu0
    %v879 = vadd.f32 %v799, %v878
    %v880 = vpop.f32.mrb[0].mxu0
    %881 = vmatprep.mubr.f32.mxu0 0.0
    %v882 = vand.u32 %v567, 4294901760
    %v883 = vsub.f32 %v567, %v882
    %v884 = vand.u32 %v883, 4294901760
    %885 = vmatmul.mubr.f32.gmra.mrb[0].mxu0 %v884
    %v886 = vpop.f32.mrb[0].mxu0
    %v887 = vadd.f32 %v806, %v886
    %v888 = vpop.f32.mrb[0].mxu0
    %889 = vdwg.mxu0
    %890 = vmatprep.subr.mxu0 0.0
    %891 = vmatpush1.msra.mxu0 0.0
    %892 = vmatprep.subr.mxu0 0.0
    %893 = vmatpush1.msra.mxu0 0.0
    %894 = vmatprep.subr.mxu0 0.0
    %895 = vmatpush1.msra.mxu0 0.0
    %896 = vmatprep.subr.mxu0 0.0
    %897 = vmatpush1.msra.mxu0 0.0
    %898 = vmatprep.subr.mxu0 0.0
    %899 = vmatpush1.msra.mxu0 0.0
    %900 = vmatprep.subr.mxu0 0.0
    %901 = vmatpush1.msra.mxu0 0.0
    %902 = vmatprep.subr.mxu0 0.0
    %903 = vmatpush1.msra.mxu0 0.0
    %904 = vmatprep.subr.mxu0 0.0
    %905 = vmatpush1.msra.mxu0 0.0
    %906 = vmatprep.subr.mxu0 0.0
    %907 = vmatpush1.msra.mxu0 0.0
    %908 = vmatprep.subr.mxu0 0.0
    %909 = vmatpush1.msra.mxu0 0.0
    %910 = vmatprep.subr.mxu0 0.0
    %911 = vmatpush1.msra.mxu0 0.0
    %912 = vmatprep.subr.mxu0 0.0
    %913 = vmatpush1.msra.mxu0 0.0
    %914 = vmatprep.subr.mxu0 0.0
    %915 = vmatpush1.msra.mxu0 0.0
    %916 = vmatprep.subr.mxu0 0.0
    %917 = vmatpush1.msra.mxu0 0.0
    %918 = vmatprep.subr.mxu0 0.0
    %919 = vmatpush1.msra.mxu0 0.0
    %920 = vmatprep.subr.mxu0 0.0
    %921 = vmatpush1.msra.mxu0 0.0
    %922 = vmatprep.subr.mxu0 0.0
    %923 = vmatpush1.msra.mxu0 0.0
    %924 = vmatprep.subr.mxu0 0.0
    %925 = vmatpush1.msra.mxu0 0.0
    %926 = vmatprep.subr.mxu0 0.0
    %927 = vmatpush1.msra.mxu0 0.0
    %928 = vmatprep.subr.mxu0 0.0
    %929 = vmatpush1.msra.mxu0 0.0
    %930 = vmatprep.subr.mxu0 0.0
    %931 = vmatpush1.msra.mxu0 0.0
    %932 = vmatprep.subr.mxu0 0.0
    %933 = vmatpush1.msra.mxu0 0.0
    %934 = vmatprep.subr.mxu0 0.0
    %935 = vmatpush1.msra.mxu0 0.0
    %936 = vmatprep.subr.mxu0 0.0
    %937 = vmatpush1.msra.mxu0 0.0
    %938 = vmatprep.subr.mxu0 0.0
    %939 = vmatpush1.msra.mxu0 0.0
    %940 = vmatprep.subr.mxu0 0.0
    %941 = vmatpush1.msra.mxu0 0.0
    %942 = vmatprep.subr.mxu0 0.0
    %943 = vmatpush1.msra.mxu0 0.0
    %944 = vmatprep.subr.mxu0 0.0
    %945 = vmatpush1.msra.mxu0 0.0
    %946 = vmatprep.subr.mxu0 0.0
    %947 = vmatpush1.msra.mxu0 0.0
    %948 = vmatprep.subr.mxu0 0.0
    %949 = vmatpush1.msra.mxu0 0.0
    %950 = vmatprep.subr.mxu0 0.0
    %951 = vmatpush1.msra.mxu0 0.0
    %952 = vmatprep.subr.mxu0 0.0
    %953 = vmatpush1.msra.mxu0 0.0
    %954 = vmatprep.mubr.f32.mxu0 0.0
    %v955 = vand.u32 %v566, 4294901760
    %956 = vmatmul.mubr.f32.gmra.mrb[0].mxu0 %v955
    %v957 = vpop.f32.mrb[0].mxu0
    %v958 = vadd.f32 %v879, %v957
    %v959 = vpop.f32.mrb[0].mxu0
    %960 = vmatprep.mubr.f32.mxu0 0.0
    %v961 = vand.u32 %v567, 4294901760
    %962 = vmatmul.mubr.f32.gmra.mrb[0].mxu0 %v961
    %v963 = vpop.f32.mrb[0].mxu0
    %v964 = vadd.f32 %v887, %v963
    %v965 = vpop.f32.mrb[0].mxu0
    %966 = vdwg.mxu0
    %967 = vmatprep.subr.mxu0 0.0
    %968 = vmatpush1.msra.mxu0 1.0
    %969 = vmatprep.subr.mxu0 0.0
    %970 = vmatpush1.msra.mxu0 1.0
    %971 = vmatprep.subr.mxu0 0.0
    %972 = vmatpush1.msra.mxu0 1.0
    %973 = vmatprep.subr.mxu0 0.0
    %974 = vmatpush1.msra.mxu0 1.0
    %975 = vmatprep.subr.mxu0 0.0
    %976 = vmatpush1.msra.mxu0 1.0
    %977 = vmatprep.subr.mxu0 0.0
    %978 = vmatpush1.msra.mxu0 1.0
    %979 = vmatprep.subr.mxu0 0.0
    %980 = vmatpush1.msra.mxu0 1.0
    %981 = vmatprep.subr.mxu0 0.0
    %982 = vmatpush1.msra.mxu0 1.0
    %983 = vmatprep.subr.mxu0 0.0
    %984 = vmatpush1.msra.mxu0 1.0
    %985 = vmatprep.subr.mxu0 0.0
    %986 = vmatpush1.msra.mxu0 1.0
    %987 = vmatprep.subr.mxu0 0.0
    %988 = vmatpush1.msra.mxu0 1.0
    %989 = vmatprep.subr.mxu0 0.0
    %990 = vmatpush1.msra.mxu0 1.0
    %991 = vmatprep.subr.mxu0 0.0
    %992 = vmatpush1.msra.mxu0 1.0
    %993 = vmatprep.subr.mxu0 0.0
    %994 = vmatpush1.msra.mxu0 1.0
    %995 = vmatprep.subr.mxu0 0.0
    %996 = vmatpush1.msra.mxu0 1.0
    %997 = vmatprep.subr.mxu0 0.0
    %998 = vmatpush1.msra.mxu0 1.0
    %999 = vmatprep.subr.mxu0 0.0
    %1000 = vmatpush1.msra.mxu0 0.0
    %1001 = vmatprep.subr.mxu0 0.0
    %1002 = vmatpush1.msra.mxu0 0.0
    %1003 = vmatprep.subr.mxu0 0.0
    %1004 = vmatpush1.msra.mxu0 0.0
    %1005 = vmatprep.subr.mxu0 0.0
    %1006 = vmatpush1.msra.mxu0 0.0
    %1007 = vmatprep.subr.mxu0 0.0
    %1008 = vmatpush1.msra.mxu0 0.0
    %1009 = vmatprep.subr.mxu0 0.0
    %1010 = vmatpush1.msra.mxu0 0.0
    %1011 = vmatprep.subr.mxu0 0.0
    %1012 = vmatpush1.msra.mxu0 0.0
    %1013 = vmatprep.subr.mxu0 0.0
    %1014 = vmatpush1.msra.mxu0 0.0
    %1015 = vmatprep.subr.mxu0 0.0
    %1016 = vmatpush1.msra.mxu0 0.0
    %1017 = vmatprep.subr.mxu0 0.0
    %1018 = vmatpush1.msra.mxu0 0.0
    %1019 = vmatprep.subr.mxu0 0.0
    %1020 = vmatpush1.msra.mxu0 0.0
    %1021 = vmatprep.subr.mxu0 0.0
    %1022 = vmatpush1.msra.mxu0 0.0
    %1023 = vmatprep.subr.mxu0 0.0
    %1024 = vmatpush1.msra.mxu0 0.0
    %1025 = vmatprep.subr.mxu0 0.0
    %1026 = vmatpush1.msra.mxu0 0.0
    %1027 = vmatprep.subr.mxu0 0.0
    %1028 = vmatpush1.msra.mxu0 0.0
    %1029 = vmatprep.subr.mxu0 0.0
    %1030 = vmatpush1.msra.mxu0 0.0
    %1031 = vmatprep.mubr.f32.mxu0 0.0
    %v1032 = vand.u32 %v566, 4294901760
    %1033 = vmatmul.mubr.f32.gmra.mrb[0].mxu0 %v1032
    %v1034 = vpop.f32.mrb[0].mxu0
    %v1035 = vadd.f32 %v958, %v1034
    %v1036 = vpop.f32.mrb[0].mxu0
    %1037 = vmatprep.mubr.f32.mxu0 0.0
    %v1038 = vand.u32 %v567, 4294901760
    %1039 = vmatmul.mubr.f32.gmra.mrb[0].mxu0 %v1038
    %v1040 = vpop.f32.mrb[0].mxu0
    %v1041 = vadd.f32 %v964, %v1040
    %v1042 = vpop.f32.mrb[0].mxu0
    %1043 = vdwg.mxu0
    %v1044 = vmax.f32 %v1035, 1e-12
    %v1045 = vmax.f32 %v1041, 1e-12
    %v1046 = vmul.f32 %v84, %v84
    %v1047 = vmul.f32 %v85, %v85
    %1048 = vmatprep.subr.mxu0 0.0
    %1049 = vmatpush1.msra.mxu0 1.0
    %1050 = vmatprep.subr.mxu0 0.0
    %1051 = vmatpush1.msra.mxu0 1.0
    %1052 = vmatprep.subr.mxu0 0.0
    %1053 = vmatpush1.msra.mxu0 1.0
    %1054 = vmatprep.subr.mxu0 0.0
    %1055 = vmatpush1.msra.mxu0 1.0
    %1056 = vmatprep.subr.mxu0 0.0
    %1057 = vmatpush1.msra.mxu0 1.0
    %1058 = vmatprep.subr.mxu0 0.0
    %1059 = vmatpush1.msra.mxu0 1.0
    %1060 = vmatprep.subr.mxu0 0.0
    %1061 = vmatpush1.msra.mxu0 1.0
    %1062 = vmatprep.subr.mxu0 0.0
    %1063 = vmatpush1.msra.mxu0 1.0
    %1064 = vmatprep.subr.mxu0 0.0
    %1065 = vmatpush1.msra.mxu0 1.0
    %1066 = vmatprep.subr.mxu0 0.0
    %1067 = vmatpush1.msra.mxu0 1.0
    %1068 = vmatprep.subr.mxu0 0.0
    %1069 = vmatpush1.msra.mxu0 1.0
    %1070 = vmatprep.subr.mxu0 0.0
    %1071 = vmatpush1.msra.mxu0 1.0
    %1072 = vmatprep.subr.mxu0 0.0
    %1073 = vmatpush1.msra.mxu0 1.0
    %1074 = vmatprep.subr.mxu0 0.0
    %1075 = vmatpush1.msra.mxu0 1.0
    %1076 = vmatprep.subr.mxu0 0.0
    %1077 = vmatpush1.msra.mxu0 1.0
    %1078 = vmatprep.subr.mxu0 0.0
    %1079 = vmatpush1.msra.mxu0 1.0
    %1080 = vmatprep.subr.mxu0 0.0
    %1081 = vmatpush1.msra.mxu0 0.0
    %1082 = vmatprep.subr.mxu0 0.0
    %1083 = vmatpush1.msra.mxu0 0.0
    %1084 = vmatprep.subr.mxu0 0.0
    %1085 = vmatpush1.msra.mxu0 0.0
    %1086 = vmatprep.subr.mxu0 0.0
    %1087 = vmatpush1.msra.mxu0 0.0
    %1088 = vmatprep.subr.mxu0 0.0
    %1089 = vmatpush1.msra.mxu0 0.0
    %1090 = vmatprep.subr.mxu0 0.0
    %1091 = vmatpush1.msra.mxu0 0.0
    %1092 = vmatprep.subr.mxu0 0.0
    %1093 = vmatpush1.msra.mxu0 0.0
    %1094 = vmatprep.subr.mxu0 0.0
    %1095 = vmatpush1.msra.mxu0 0.0
    %1096 = vmatprep.subr.mxu0 0.0
    %1097 = vmatpush1.msra.mxu0 0.0
    %1098 = vmatprep.subr.mxu0 0.0
    %1099 = vmatpush1.msra.mxu0 0.0
    %1100 = vmatprep.subr.mxu0 0.0
    %1101 = vmatpush1.msra.mxu0 0.0
    %1102 = vmatprep.subr.mxu0 0.0
    %1103 = vmatpush1.msra.mxu0 0.0
    %1104 = vmatprep.subr.mxu0 0.0
    %1105 = vmatpush1.msra.mxu0 0.0
    %1106 = vmatprep.subr.mxu0 0.0
    %1107 = vmatpush1.msra.mxu0 0.0
    %1108 = vmatprep.subr.mxu0 0.0
    %1109 = vmatpush1.msra.mxu0 0.0
    %1110 = vmatprep.subr.mxu0 0.0
    %1111 = vmatpush1.msra.mxu0 0.0
    %1112 = vmatprep.mubr.f32.mxu0 0.0
    %v1113 = vand.u32 %v1046, 4294901760
    %v1114 = vsub.f32 %v1046, %v1113
    %v1115 = vand.u32 %v1114, 4294901760
    %v1116 = vsub.f32 %v1114, %v1115
    %v1117 = vand.u32 %v1116, 4294901760
    %1118 = vmatmul.mubr.f32.gmra.mrb[0].mxu0 %v1117
    %v1119 = vpop.f32.mrb[0].mxu0
    %v1120 = vadd.f32 0.0, %v1119
    %v1121 = vpop.f32.mrb[0].mxu0
    %1122 = vmatprep.mubr.f32.mxu0 0.0
    %v1123 = vand.u32 %v1047, 4294901760
    %v1124 = vsub.f32 %v1047, %v1123
    %v1125 = vand.u32 %v1124, 4294901760
    %v1126 = vsub.f32 %v1124, %v1125
    %v1127 = vand.u32 %v1126, 4294901760
    %1128 = vmatmul.mubr.f32.gmra.mrb[0].mxu0 %v1127
    %v1129 = vpop.f32.mrb[0].mxu0
    %v1130 = vadd.f32 0.0, %v1129
    %v1131 = vpop.f32.mrb[0].mxu0
    %1132 = vdwg.mxu0
    %1133 = vmatprep.subr.mxu0 0.0
    %1134 = vmatpush1.msra.mxu0 0.0
    %1135 = vmatprep.subr.mxu0 0.0
    %1136 = vmatpush1.msra.mxu0 0.0
    %1137 = vmatprep.subr.mxu0 0.0
    %1138 = vmatpush1.msra.mxu0 0.0
    %1139 = vmatprep.subr.mxu0 0.0
    %1140 = vmatpush1.msra.mxu0 0.0
    %1141 = vmatprep.subr.mxu0 0.0
    %1142 = vmatpush1.msra.mxu0 0.0
    %1143 = vmatprep.subr.mxu0 0.0
    %1144 = vmatpush1.msra.mxu0 0.0
    %1145 = vmatprep.subr.mxu0 0.0
    %1146 = vmatpush1.msra.mxu0 0.0
    %1147 = vmatprep.subr.mxu0 0.0
    %1148 = vmatpush1.msra.mxu0 0.0
    %1149 = vmatprep.subr.mxu0 0.0
    %1150 = vmatpush1.msra.mxu0 0.0
    %1151 = vmatprep.subr.mxu0 0.0
    %1152 = vmatpush1.msra.mxu0 0.0
    %1153 = vmatprep.subr.mxu0 0.0
    %1154 = vmatpush1.msra.mxu0 0.0
    %1155 = vmatprep.subr.mxu0 0.0
    %1156 = vmatpush1.msra.mxu0 0.0
    %1157 = vmatprep.subr.mxu0 0.0
    %1158 = vmatpush1.msra.mxu0 0.0
    %1159 = vmatprep.subr.mxu0 0.0
    %1160 = vmatpush1.msra.mxu0 0.0
    %1161 = vmatprep.subr.mxu0 0.0
    %1162 = vmatpush1.msra.mxu0 0.0
    %1163 = vmatprep.subr.mxu0 0.0
    %1164 = vmatpush1.msra.mxu0 0.0
    %1165 = vmatprep.subr.mxu0 0.0
    %1166 = vmatpush1.msra.mxu0 0.0
    %1167 = vmatprep.subr.mxu0 0.0
    %1168 = vmatpush1.msra.mxu0 0.0
    %1169 = vmatprep.subr.mxu0 0.0
    %1170 = vmatpush1.msra.mxu0 0.0
    %1171 = vmatprep.subr.mxu0 0.0
    %1172 = vmatpush1.msra.mxu0 0.0
    %1173 = vmatprep.subr.mxu0 0.0
    %1174 = vmatpush1.msra.mxu0 0.0
    %1175 = vmatprep.subr.mxu0 0.0
    %1176 = vmatpush1.msra.mxu0 0.0
    %1177 = vmatprep.subr.mxu0 0.0
    %1178 = vmatpush1.msra.mxu0 0.0
    %1179 = vmatprep.subr.mxu0 0.0
    %1180 = vmatpush1.msra.mxu0 0.0
    %1181 = vmatprep.subr.mxu0 0.0
    %1182 = vmatpush1.msra.mxu0 0.0
    %1183 = vmatprep.subr.mxu0 0.0
    %1184 = vmatpush1.msra.mxu0 0.0
    %1185 = vmatprep.subr.mxu0 0.0
    %1186 = vmatpush1.msra.mxu0 0.0
    %1187 = vmatprep.subr.mxu0 0.0
    %1188 = vmatpush1.msra.mxu0 0.0
    %1189 = vmatprep.subr.mxu0 0.0
    %1190 = vmatpush1.msra.mxu0 0.0
    %1191 = vmatprep.subr.mxu0 0.0
    %1192 = vmatpush1.msra.mxu0 0.0
    %1193 = vmatprep.subr.mxu0 0.0
    %1194 = vmatpush1.msra.mxu0 0.0
    %1195 = vmatprep.subr.mxu0 0.0
    %1196 = vmatpush1.msra.mxu0 0.0
    %1197 = vmatprep.mubr.f32.mxu0 0.0
    %v1198 = vand.u32 %v1046, 4294901760
    %1199 = vmatmul.mubr.f32.gmra.mrb[0].mxu0 %v1198
    %v1200 = vpop.f32.mrb[0].mxu0
    %v1201 = vadd.f32 %v1120, %v1200
    %v1202 = vpop.f32.mrb[0].mxu0
    %1203 = vmatprep.mubr.f32.mxu0 0.0
    %v1204 = vand.u32 %v1047, 4294901760
    %1205 = vmatmul.mubr.f32.gmra.mrb[0].mxu0 %v1204
    %v1206 = vpop.f32.mrb[0].mxu0
    %v1207 = vadd.f32 %v1130, %v1206
    %v1208 = vpop.f32.mrb[0].mxu0
    %1209 = vdwg.mxu0
    %1210 = vmatprep.subr.mxu0 0.0
    %1211 = vmatpush1.msra.mxu0 0.0
    %1212 = vmatprep.subr.mxu0 0.0
    %1213 = vmatpush1.msra.mxu0 0.0
    %1214 = vmatprep.subr.mxu0 0.0
    %1215 = vmatpush1.msra.mxu0 0.0
    %1216 = vmatprep.subr.mxu0 0.0
    %1217 = vmatpush1.msra.mxu0 0.0
    %1218 = vmatprep.subr.mxu0 0.0
    %1219 = vmatpush1.msra.mxu0 0.0
    %1220 = vmatprep.subr.mxu0 0.0
    %1221 = vmatpush1.msra.mxu0 0.0
    %1222 = vmatprep.subr.mxu0 0.0
    %1223 = vmatpush1.msra.mxu0 0.0
    %1224 = vmatprep.subr.mxu0 0.0
    %1225 = vmatpush1.msra.mxu0 0.0
    %1226 = vmatprep.subr.mxu0 0.0
    %1227 = vmatpush1.msra.mxu0 0.0
    %1228 = vmatprep.subr.mxu0 0.0
    %1229 = vmatpush1.msra.mxu0 0.0
    %1230 = vmatprep.subr.mxu0 0.0
    %1231 = vmatpush1.msra.mxu0 0.0
    %1232 = vmatprep.subr.mxu0 0.0
    %1233 = vmatpush1.msra.mxu0 0.0
    %1234 = vmatprep.subr.mxu0 0.0
    %1235 = vmatpush1.msra.mxu0 0.0
    %1236 = vmatprep.subr.mxu0 0.0
    %1237 = vmatpush1.msra.mxu0 0.0
    %1238 = vmatprep.subr.mxu0 0.0
    %1239 = vmatpush1.msra.mxu0 0.0
    %1240 = vmatprep.subr.mxu0 0.0
    %1241 = vmatpush1.msra.mxu0 0.0
    %1242 = vmatprep.subr.mxu0 0.0
    %1243 = vmatpush1.msra.mxu0 0.0
    %1244 = vmatprep.subr.mxu0 0.0
    %1245 = vmatpush1.msra.mxu0 0.0
    %1246 = vmatprep.subr.mxu0 0.0
    %1247 = vmatpush1.msra.mxu0 0.0
    %1248 = vmatprep.subr.mxu0 0.0
    %1249 = vmatpush1.msra.mxu0 0.0
    %1250 = vmatprep.subr.mxu0 0.0
    %1251 = vmatpush1.msra.mxu0 0.0
    %1252 = vmatprep.subr.mxu0 0.0
    %1253 = vmatpush1.msra.mxu0 0.0
    %1254 = vmatprep.subr.mxu0 0.0
    %1255 = vmatpush1.msra.mxu0 0.0
    %1256 = vmatprep.subr.mxu0 0.0
    %1257 = vmatpush1.msra.mxu0 0.0
    %1258 = vmatprep.subr.mxu0 0.0
    %1259 = vmatpush1.msra.mxu0 0.0
    %1260 = vmatprep.subr.mxu0 0.0
    %1261 = vmatpush1.msra.mxu0 0.0
    %1262 = vmatprep.subr.mxu0 0.0
    %1263 = vmatpush1.msra.mxu0 0.0
    %1264 = vmatprep.subr.mxu0 0.0
    %1265 = vmatpush1.msra.mxu0 0.0
    %1266 = vmatprep.subr.mxu0 0.0
    %1267 = vmatpush1.msra.mxu0 0.0
    %1268 = vmatprep.subr.mxu0 0.0
    %1269 = vmatpush1.msra.mxu0 0.0
    %1270 = vmatprep.subr.mxu0 0.0
    %1271 = vmatpush1.msra.mxu0 0.0
    %1272 = vmatprep.subr.mxu0 0.0
    %1273 = vmatpush1.msra.mxu0 0.0
    %1274 = vmatprep.mubr.f32.mxu0 0.0
    %v1275 = vand.u32 %v1046, 4294901760
    %v1276 = vsub.f32 %v1046, %v1275
    %1277 = vmatmul.mubr.f32.gmra.mrb[0].mxu0 %v1276
    %v1278 = vpop.f32.mrb[0].mxu0
    %v1279 = vadd.f32 %v1201, %v1278
    %v1280 = vpop.f32.mrb[0].mxu0
    %1281 = vmatprep.mubr.f32.mxu0 0.0
    %v1282 = vand.u32 %v1047, 4294901760
    %v1283 = vsub.f32 %v1047, %v1282
    %1284 = vmatmul.mubr.f32.gmra.mrb[0].mxu0 %v1283
    %v1285 = vpop.f32.mrb[0].mxu0
    %v1286 = vadd.f32 %v1207, %v1285
    %v1287 = vpop.f32.mrb[0].mxu0
    %1288 = vdwg.mxu0
    %1289 = vmatprep.subr.mxu0 0.0
    %1290 = vmatpush1.msra.mxu0 1.0
    %1291 = vmatprep.subr.mxu0 0.0
    %1292 = vmatpush1.msra.mxu0 1.0
    %1293 = vmatprep.subr.mxu0 0.0
    %1294 = vmatpush1.msra.mxu0 1.0
    %1295 = vmatprep.subr.mxu0 0.0
    %1296 = vmatpush1.msra.mxu0 1.0
    %1297 = vmatprep.subr.mxu0 0.0
    %1298 = vmatpush1.msra.mxu0 1.0
    %1299 = vmatprep.subr.mxu0 0.0
    %1300 = vmatpush1.msra.mxu0 1.0
    %1301 = vmatprep.subr.mxu0 0.0
    %1302 = vmatpush1.msra.mxu0 1.0
    %1303 = vmatprep.subr.mxu0 0.0
    %1304 = vmatpush1.msra.mxu0 1.0
    %1305 = vmatprep.subr.mxu0 0.0
    %1306 = vmatpush1.msra.mxu0 1.0
    %1307 = vmatprep.subr.mxu0 0.0
    %1308 = vmatpush1.msra.mxu0 1.0
    %1309 = vmatprep.subr.mxu0 0.0
    %1310 = vmatpush1.msra.mxu0 1.0
    %1311 = vmatprep.subr.mxu0 0.0
    %1312 = vmatpush1.msra.mxu0 1.0
    %1313 = vmatprep.subr.mxu0 0.0
    %1314 = vmatpush1.msra.mxu0 1.0
    %1315 = vmatprep.subr.mxu0 0.0
    %1316 = vmatpush1.msra.mxu0 1.0
    %1317 = vmatprep.subr.mxu0 0.0
    %1318 = vmatpush1.msra.mxu0 1.0
    %1319 = vmatprep.subr.mxu0 0.0
    %1320 = vmatpush1.msra.mxu0 1.0
    %1321 = vmatprep.subr.mxu0 0.0
    %1322 = vmatpush1.msra.mxu0 0.0
    %1323 = vmatprep.subr.mxu0 0.0
    %1324 = vmatpush1.msra.mxu0 0.0
    %1325 = vmatprep.subr.mxu0 0.0
    %1326 = vmatpush1.msra.mxu0 0.0
    %1327 = vmatprep.subr.mxu0 0.0
    %1328 = vmatpush1.msra.mxu0 0.0
    %1329 = vmatprep.subr.mxu0 0.0
    %1330 = vmatpush1.msra.mxu0 0.0
    %1331 = vmatprep.subr.mxu0 0.0
    %1332 = vmatpush1.msra.mxu0 0.0
    %1333 = vmatprep.subr.mxu0 0.0
    %1334 = vmatpush1.msra.mxu0 0.0
    %1335 = vmatprep.subr.mxu0 0.0
    %1336 = vmatpush1.msra.mxu0 0.0
    %1337 = vmatprep.subr.mxu0 0.0
    %1338 = vmatpush1.msra.mxu0 0.0
    %1339 = vmatprep.subr.mxu0 0.0
    %1340 = vmatpush1.msra.mxu0 0.0
    %1341 = vmatprep.subr.mxu0 0.0
    %1342 = vmatpush1.msra.mxu0 0.0
    %1343 = vmatprep.subr.mxu0 0.0
    %1344 = vmatpush1.msra.mxu0 0.0
    %1345 = vmatprep.subr.mxu0 0.0
    %1346 = vmatpush1.msra.mxu0 0.0
    %1347 = vmatprep.subr.mxu0 0.0
    %1348 = vmatpush1.msra.mxu0 0.0
    %1349 = vmatprep.subr.mxu0 0.0
    %1350 = vmatpush1.msra.mxu0 0.0
    %1351 = vmatprep.subr.mxu0 0.0
    %1352 = vmatpush1.msra.mxu0 0.0
    %1353 = vmatprep.mubr.f32.mxu0 0.0
    %v1354 = vand.u32 %v1046, 4294901760
    %v1355 = vsub.f32 %v1046, %v1354
    %v1356 = vand.u32 %v1355, 4294901760
    %1357 = vmatmul.mubr.f32.gmra.mrb[0].mxu0 %v1356
    %v1358 = vpop.f32.mrb[0].mxu0
    %v1359 = vadd.f32 %v1279, %v1358
    %v1360 = vpop.f32.mrb[0].mxu0
    %1361 = vmatprep.mubr.f32.mxu0 0.0
    %v1362 = vand.u32 %v1047, 4294901760
    %v1363 = vsub.f32 %v1047, %v1362
    %v1364 = vand.u32 %v1363, 4294901760
    %1365 = vmatmul.mubr.f32.gmra.mrb[0].mxu0 %v1364
    %v1366 = vpop.f32.mrb[0].mxu0
    %v1367 = vadd.f32 %v1286, %v1366
    %v1368 = vpop.f32.mrb[0].mxu0
    %1369 = vdwg.mxu0
    %1370 = vmatprep.subr.mxu0 0.0
    %1371 = vmatpush1.msra.mxu0 0.0
    %1372 = vmatprep.subr.mxu0 0.0
    %1373 = vmatpush1.msra.mxu0 0.0
    %1374 = vmatprep.subr.mxu0 0.0
    %1375 = vmatpush1.msra.mxu0 0.0
    %1376 = vmatprep.subr.mxu0 0.0
    %1377 = vmatpush1.msra.mxu0 0.0
    %1378 = vmatprep.subr.mxu0 0.0
    %1379 = vmatpush1.msra.mxu0 0.0
    %1380 = vmatprep.subr.mxu0 0.0
    %1381 = vmatpush1.msra.mxu0 0.0
    %1382 = vmatprep.subr.mxu0 0.0
    %1383 = vmatpush1.msra.mxu0 0.0
    %1384 = vmatprep.subr.mxu0 0.0
    %1385 = vmatpush1.msra.mxu0 0.0
    %1386 = vmatprep.subr.mxu0 0.0
    %1387 = vmatpush1.msra.mxu0 0.0
    %1388 = vmatprep.subr.mxu0 0.0
    %1389 = vmatpush1.msra.mxu0 0.0
    %1390 = vmatprep.subr.mxu0 0.0
    %1391 = vmatpush1.msra.mxu0 0.0
    %1392 = vmatprep.subr.mxu0 0.0
    %1393 = vmatpush1.msra.mxu0 0.0
    %1394 = vmatprep.subr.mxu0 0.0
    %1395 = vmatpush1.msra.mxu0 0.0
    %1396 = vmatprep.subr.mxu0 0.0
    %1397 = vmatpush1.msra.mxu0 0.0
    %1398 = vmatprep.subr.mxu0 0.0
    %1399 = vmatpush1.msra.mxu0 0.0
    %1400 = vmatprep.subr.mxu0 0.0
    %1401 = vmatpush1.msra.mxu0 0.0
    %1402 = vmatprep.subr.mxu0 0.0
    %1403 = vmatpush1.msra.mxu0 0.0
    %1404 = vmatprep.subr.mxu0 0.0
    %1405 = vmatpush1.msra.mxu0 0.0
    %1406 = vmatprep.subr.mxu0 0.0
    %1407 = vmatpush1.msra.mxu0 0.0
    %1408 = vmatprep.subr.mxu0 0.0
    %1409 = vmatpush1.msra.mxu0 0.0
    %1410 = vmatprep.subr.mxu0 0.0
    %1411 = vmatpush1.msra.mxu0 0.0
    %1412 = vmatprep.subr.mxu0 0.0
    %1413 = vmatpush1.msra.mxu0 0.0
    %1414 = vmatprep.subr.mxu0 0.0
    %1415 = vmatpush1.msra.mxu0 0.0
    %1416 = vmatprep.subr.mxu0 0.0
    %1417 = vmatpush1.msra.mxu0 0.0
    %1418 = vmatprep.subr.mxu0 0.0
    %1419 = vmatpush1.msra.mxu0 0.0
    %1420 = vmatprep.subr.mxu0 0.0
    %1421 = vmatpush1.msra.mxu0 0.0
    %1422 = vmatprep.subr.mxu0 0.0
    %1423 = vmatpush1.msra.mxu0 0.0
    %1424 = vmatprep.subr.mxu0 0.0
    %1425 = vmatpush1.msra.mxu0 0.0
    %1426 = vmatprep.subr.mxu0 0.0
    %1427 = vmatpush1.msra.mxu0 0.0
    %1428 = vmatprep.subr.mxu0 0.0
    %1429 = vmatpush1.msra.mxu0 0.0
    %1430 = vmatprep.subr.mxu0 0.0
    %1431 = vmatpush1.msra.mxu0 0.0
    %1432 = vmatprep.subr.mxu0 0.0
    %1433 = vmatpush1.msra.mxu0 0.0
    %1434 = vmatprep.mubr.f32.mxu0 0.0
    %v1435 = vand.u32 %v1046, 4294901760
    %1436 = vmatmul.mubr.f32.gmra.mrb[0].mxu0 %v1435
    %v1437 = vpop.f32.mrb[0].mxu0
    %v1438 = vadd.f32 %v1359, %v1437
    %v1439 = vpop.f32.mrb[0].mxu0
    %1440 = vmatprep.mubr.f32.mxu0 0.0
    %v1441 = vand.u32 %v1047, 4294901760
    %1442 = vmatmul.mubr.f32.gmra.mrb[0].mxu0 %v1441
    %v1443 = vpop.f32.mrb[0].mxu0
    %v1444 = vadd.f32 %v1367, %v1443
    %v1445 = vpop.f32.mrb[0].mxu0
    %1446 = vdwg.mxu0
    %1447 = vmatprep.subr.mxu0 0.0
    %1448 = vmatpush1.msra.mxu0 1.0
    %1449 = vmatprep.subr.mxu0 0.0
    %1450 = vmatpush1.msra.mxu0 1.0
    %1451 = vmatprep.subr.mxu0 0.0
    %1452 = vmatpush1.msra.mxu0 1.0
    %1453 = vmatprep.subr.mxu0 0.0
    %1454 = vmatpush1.msra.mxu0 1.0
    %1455 = vmatprep.subr.mxu0 0.0
    %1456 = vmatpush1.msra.mxu0 1.0
    %1457 = vmatprep.subr.mxu0 0.0
    %1458 = vmatpush1.msra.mxu0 1.0
    %1459 = vmatprep.subr.mxu0 0.0
    %1460 = vmatpush1.msra.mxu0 1.0
    %1461 = vmatprep.subr.mxu0 0.0
    %1462 = vmatpush1.msra.mxu0 1.0
    %1463 = vmatprep.subr.mxu0 0.0
    %1464 = vmatpush1.msra.mxu0 1.0
    %1465 = vmatprep.subr.mxu0 0.0
    %1466 = vmatpush1.msra.mxu0 1.0
    %1467 = vmatprep.subr.mxu0 0.0
    %1468 = vmatpush1.msra.mxu0 1.0
    %1469 = vmatprep.subr.mxu0 0.0
    %1470 = vmatpush1.msra.mxu0 1.0
    %1471 = vmatprep.subr.mxu0 0.0
    %1472 = vmatpush1.msra.mxu0 1.0
    %1473 = vmatprep.subr.mxu0 0.0
    %1474 = vmatpush1.msra.mxu0 1.0
    %1475 = vmatprep.subr.mxu0 0.0
    %1476 = vmatpush1.msra.mxu0 1.0
    %1477 = vmatprep.subr.mxu0 0.0
    %1478 = vmatpush1.msra.mxu0 1.0
    %1479 = vmatprep.subr.mxu0 0.0
    %1480 = vmatpush1.msra.mxu0 0.0
    %1481 = vmatprep.subr.mxu0 0.0
    %1482 = vmatpush1.msra.mxu0 0.0
    %1483 = vmatprep.subr.mxu0 0.0
    %1484 = vmatpush1.msra.mxu0 0.0
    %1485 = vmatprep.subr.mxu0 0.0
    %1486 = vmatpush1.msra.mxu0 0.0
    %1487 = vmatprep.subr.mxu0 0.0
    %1488 = vmatpush1.msra.mxu0 0.0
    %1489 = vmatprep.subr.mxu0 0.0
    %1490 = vmatpush1.msra.mxu0 0.0
    %1491 = vmatprep.subr.mxu0 0.0
    %1492 = vmatpush1.msra.mxu0 0.0
    %1493 = vmatprep.subr.mxu0 0.0
    %1494 = vmatpush1.msra.mxu0 0.0
    %1495 = vmatprep.subr.mxu0 0.0
    %1496 = vmatpush1.msra.mxu0 0.0
    %1497 = vmatprep.subr.mxu0 0.0
    %1498 = vmatpush1.msra.mxu0 0.0
    %1499 = vmatprep.subr.mxu0 0.0
    %1500 = vmatpush1.msra.mxu0 0.0
    %1501 = vmatprep.subr.mxu0 0.0
    %1502 = vmatpush1.msra.mxu0 0.0
    %1503 = vmatprep.subr.mxu0 0.0
    %1504 = vmatpush1.msra.mxu0 0.0
    %1505 = vmatprep.subr.mxu0 0.0
    %1506 = vmatpush1.msra.mxu0 0.0
    %1507 = vmatprep.subr.mxu0 0.0
    %1508 = vmatpush1.msra.mxu0 0.0
    %1509 = vmatprep.subr.mxu0 0.0
    %1510 = vmatpush1.msra.mxu0 0.0
    %1511 = vmatprep.mubr.f32.mxu0 0.0
    %v1512 = vand.u32 %v1046, 4294901760
    %1513 = vmatmul.mubr.f32.gmra.mrb[0].mxu0 %v1512
    %v1514 = vpop.f32.mrb[0].mxu0
    %v1515 = vadd.f32 %v1438, %v1514
    %v1516 = vpop.f32.mrb[0].mxu0
    %1517 = vmatprep.mubr.f32.mxu0 0.0
    %v1518 = vand.u32 %v1047, 4294901760
    %1519 = vmatmul.mubr.f32.gmra.mrb[0].mxu0 %v1518
    %v1520 = vpop.f32.mrb[0].mxu0
    %v1521 = vadd.f32 %v1444, %v1520
    %v1522 = vpop.f32.mrb[0].mxu0
    %1523 = vdwg.mxu0
    %v1524 = vmax.f32 %v1515, 1e-12
    %v1525 = vmax.f32 %v1521, 1e-12
    %v1526 = vmul.f32 %v80, %v82
    %v1527 = vmul.f32 %v81, %v83
    %1528 = vmatprep.subr.mxu0 0.0
    %1529 = vmatpush1.msra.mxu0 1.0
    %1530 = vmatprep.subr.mxu0 0.0
    %1531 = vmatpush1.msra.mxu0 1.0
    %1532 = vmatprep.subr.mxu0 0.0
    %1533 = vmatpush1.msra.mxu0 1.0
    %1534 = vmatprep.subr.mxu0 0.0
    %1535 = vmatpush1.msra.mxu0 1.0
    %1536 = vmatprep.subr.mxu0 0.0
    %1537 = vmatpush1.msra.mxu0 1.0
    %1538 = vmatprep.subr.mxu0 0.0
    %1539 = vmatpush1.msra.mxu0 1.0
    %1540 = vmatprep.subr.mxu0 0.0
    %1541 = vmatpush1.msra.mxu0 1.0
    %1542 = vmatprep.subr.mxu0 0.0
    %1543 = vmatpush1.msra.mxu0 1.0
    %1544 = vmatprep.subr.mxu0 0.0
    %1545 = vmatpush1.msra.mxu0 1.0
    %1546 = vmatprep.subr.mxu0 0.0
    %1547 = vmatpush1.msra.mxu0 1.0
    %1548 = vmatprep.subr.mxu0 0.0
    %1549 = vmatpush1.msra.mxu0 1.0
    %1550 = vmatprep.subr.mxu0 0.0
    %1551 = vmatpush1.msra.mxu0 1.0
    %1552 = vmatprep.subr.mxu0 0.0
    %1553 = vmatpush1.msra.mxu0 1.0
    %1554 = vmatprep.subr.mxu0 0.0
    %1555 = vmatpush1.msra.mxu0 1.0
    %1556 = vmatprep.subr.mxu0 0.0
    %1557 = vmatpush1.msra.mxu0 1.0
    %1558 = vmatprep.subr.mxu0 0.0
    %1559 = vmatpush1.msra.mxu0 1.0
    %1560 = vmatprep.subr.mxu0 0.0
    %1561 = vmatpush1.msra.mxu0 0.0
    %1562 = vmatprep.subr.mxu0 0.0
    %1563 = vmatpush1.msra.mxu0 0.0
    %1564 = vmatprep.subr.mxu0 0.0
    %1565 = vmatpush1.msra.mxu0 0.0
    %1566 = vmatprep.subr.mxu0 0.0
    %1567 = vmatpush1.msra.mxu0 0.0
    %1568 = vmatprep.subr.mxu0 0.0
    %1569 = vmatpush1.msra.mxu0 0.0
    %1570 = vmatprep.subr.mxu0 0.0
    %1571 = vmatpush1.msra.mxu0 0.0
    %1572 = vmatprep.subr.mxu0 0.0
    %1573 = vmatpush1.msra.mxu0 0.0
    %1574 = vmatprep.subr.mxu0 0.0
    %1575 = vmatpush1.msra.mxu0 0.0
    %1576 = vmatprep.subr.mxu0 0.0
    %1577 = vmatpush1.msra.mxu0 0.0
    %1578 = vmatprep.subr.mxu0 0.0
    %1579 = vmatpush1.msra.mxu0 0.0
    %1580 = vmatprep.subr.mxu0 0.0
    %1581 = vmatpush1.msra.mxu0 0.0
    %1582 = vmatprep.subr.mxu0 0.0
    %1583 = vmatpush1.msra.mxu0 0.0
    %1584 = vmatprep.subr.mxu0 0.0
    %1585 = vmatpush1.msra.mxu0 0.0
    %1586 = vmatprep.subr.mxu0 0.0
    %1587 = vmatpush1.msra.mxu0 0.0
    %1588 = vmatprep.subr.mxu0 0.0
    %1589 = vmatpush1.msra.mxu0 0.0
    %1590 = vmatprep.subr.mxu0 0.0
    %1591 = vmatpush1.msra.mxu0 0.0
    %1592 = vmatprep.mubr.f32.mxu0 0.0
    %v1593 = vand.u32 %v1526, 4294901760
    %v1594 = vsub.f32 %v1526, %v1593
    %v1595 = vand.u32 %v1594, 4294901760
    %v1596 = vsub.f32 %v1594, %v1595
    %v1597 = vand.u32 %v1596, 4294901760
    %1598 = vmatmul.mubr.f32.gmra.mrb[0].mxu0 %v1597
    %v1599 = vpop.f32.mrb[0].mxu0
    %v1600 = vadd.f32 0.0, %v1599
    %v1601 = vpop.f32.mrb[0].mxu0
    %1602 = vmatprep.mubr.f32.mxu0 0.0
    %v1603 = vand.u32 %v1527, 4294901760
    %v1604 = vsub.f32 %v1527, %v1603
    %v1605 = vand.u32 %v1604, 4294901760
    %v1606 = vsub.f32 %v1604, %v1605
    %v1607 = vand.u32 %v1606, 4294901760
    %1608 = vmatmul.mubr.f32.gmra.mrb[0].mxu0 %v1607
    %v1609 = vpop.f32.mrb[0].mxu0
    %v1610 = vadd.f32 0.0, %v1609
    %v1611 = vpop.f32.mrb[0].mxu0
    %1612 = vdwg.mxu0
    %1613 = vmatprep.subr.mxu0 0.0
    %1614 = vmatpush1.msra.mxu0 0.0
    %1615 = vmatprep.subr.mxu0 0.0
    %1616 = vmatpush1.msra.mxu0 0.0
    %1617 = vmatprep.subr.mxu0 0.0
    %1618 = vmatpush1.msra.mxu0 0.0
    %1619 = vmatprep.subr.mxu0 0.0
    %1620 = vmatpush1.msra.mxu0 0.0
    %1621 = vmatprep.subr.mxu0 0.0
    %1622 = vmatpush1.msra.mxu0 0.0
    %1623 = vmatprep.subr.mxu0 0.0
    %1624 = vmatpush1.msra.mxu0 0.0
    %1625 = vmatprep.subr.mxu0 0.0
    %1626 = vmatpush1.msra.mxu0 0.0
    %1627 = vmatprep.subr.mxu0 0.0
    %1628 = vmatpush1.msra.mxu0 0.0
    %1629 = vmatprep.subr.mxu0 0.0
    %1630 = vmatpush1.msra.mxu0 0.0
    %1631 = vmatprep.subr.mxu0 0.0
    %1632 = vmatpush1.msra.mxu0 0.0
    %1633 = vmatprep.subr.mxu0 0.0
    %1634 = vmatpush1.msra.mxu0 0.0
    %1635 = vmatprep.subr.mxu0 0.0
    %1636 = vmatpush1.msra.mxu0 0.0
    %1637 = vmatprep.subr.mxu0 0.0
    %1638 = vmatpush1.msra.mxu0 0.0
    %1639 = vmatprep.subr.mxu0 0.0
    %1640 = vmatpush1.msra.mxu0 0.0
    %1641 = vmatprep.subr.mxu0 0.0
    %1642 = vmatpush1.msra.mxu0 0.0
    %1643 = vmatprep.subr.mxu0 0.0
    %1644 = vmatpush1.msra.mxu0 0.0
    %1645 = vmatprep.subr.mxu0 0.0
    %1646 = vmatpush1.msra.mxu0 0.0
    %1647 = vmatprep.subr.mxu0 0.0
    %1648 = vmatpush1.msra.mxu0 0.0
    %1649 = vmatprep.subr.mxu0 0.0
    %1650 = vmatpush1.msra.mxu0 0.0
    %1651 = vmatprep.subr.mxu0 0.0
    %1652 = vmatpush1.msra.mxu0 0.0
    %1653 = vmatprep.subr.mxu0 0.0
    %1654 = vmatpush1.msra.mxu0 0.0
    %1655 = vmatprep.subr.mxu0 0.0
    %1656 = vmatpush1.msra.mxu0 0.0
    %1657 = vmatprep.subr.mxu0 0.0
    %1658 = vmatpush1.msra.mxu0 0.0
    %1659 = vmatprep.subr.mxu0 0.0
    %1660 = vmatpush1.msra.mxu0 0.0
    %1661 = vmatprep.subr.mxu0 0.0
    %1662 = vmatpush1.msra.mxu0 0.0
    %1663 = vmatprep.subr.mxu0 0.0
    %1664 = vmatpush1.msra.mxu0 0.0
    %1665 = vmatprep.subr.mxu0 0.0
    %1666 = vmatpush1.msra.mxu0 0.0
    %1667 = vmatprep.subr.mxu0 0.0
    %1668 = vmatpush1.msra.mxu0 0.0
    %1669 = vmatprep.subr.mxu0 0.0
    %1670 = vmatpush1.msra.mxu0 0.0
    %1671 = vmatprep.subr.mxu0 0.0
    %1672 = vmatpush1.msra.mxu0 0.0
    %1673 = vmatprep.subr.mxu0 0.0
    %1674 = vmatpush1.msra.mxu0 0.0
    %1675 = vmatprep.subr.mxu0 0.0
    %1676 = vmatpush1.msra.mxu0 0.0
    %1677 = vmatprep.mubr.f32.mxu0 0.0
    %v1678 = vand.u32 %v1526, 4294901760
    %1679 = vmatmul.mubr.f32.gmra.mrb[0].mxu0 %v1678
    %v1680 = vpop.f32.mrb[0].mxu0
    %v1681 = vadd.f32 %v1600, %v1680
    %v1682 = vpop.f32.mrb[0].mxu0
    %1683 = vmatprep.mubr.f32.mxu0 0.0
    %v1684 = vand.u32 %v1527, 4294901760
    %1685 = vmatmul.mubr.f32.gmra.mrb[0].mxu0 %v1684
    %v1686 = vpop.f32.mrb[0].mxu0
    %v1687 = vadd.f32 %v1610, %v1686
    %v1688 = vpop.f32.mrb[0].mxu0
    %1689 = vdwg.mxu0
    %1690 = vmatprep.subr.mxu0 0.0
    %1691 = vmatpush1.msra.mxu0 0.0
    %1692 = vmatprep.subr.mxu0 0.0
    %1693 = vmatpush1.msra.mxu0 0.0
    %1694 = vmatprep.subr.mxu0 0.0
    %1695 = vmatpush1.msra.mxu0 0.0
    %1696 = vmatprep.subr.mxu0 0.0
    %1697 = vmatpush1.msra.mxu0 0.0
    %1698 = vmatprep.subr.mxu0 0.0
    %1699 = vmatpush1.msra.mxu0 0.0
    %1700 = vmatprep.subr.mxu0 0.0
    %1701 = vmatpush1.msra.mxu0 0.0
    %1702 = vmatprep.subr.mxu0 0.0
    %1703 = vmatpush1.msra.mxu0 0.0
    %1704 = vmatprep.subr.mxu0 0.0
    %1705 = vmatpush1.msra.mxu0 0.0
    %1706 = vmatprep.subr.mxu0 0.0
    %1707 = vmatpush1.msra.mxu0 0.0
    %1708 = vmatprep.subr.mxu0 0.0
    %1709 = vmatpush1.msra.mxu0 0.0
    %1710 = vmatprep.subr.mxu0 0.0
    %1711 = vmatpush1.msra.mxu0 0.0
    %1712 = vmatprep.subr.mxu0 0.0
    %1713 = vmatpush1.msra.mxu0 0.0
    %1714 = vmatprep.subr.mxu0 0.0
    %1715 = vmatpush1.msra.mxu0 0.0
    %1716 = vmatprep.subr.mxu0 0.0
    %1717 = vmatpush1.msra.mxu0 0.0
    %1718 = vmatprep.subr.mxu0 0.0
    %1719 = vmatpush1.msra.mxu0 0.0
    %1720 = vmatprep.subr.mxu0 0.0
    %1721 = vmatpush1.msra.mxu0 0.0
    %1722 = vmatprep.subr.mxu0 0.0
    %1723 = vmatpush1.msra.mxu0 0.0
    %1724 = vmatprep.subr.mxu0 0.0
    %1725 = vmatpush1.msra.mxu0 0.0
    %1726 = vmatprep.subr.mxu0 0.0
    %1727 = vmatpush1.msra.mxu0 0.0
    %1728 = vmatprep.subr.mxu0 0.0
    %1729 = vmatpush1.msra.mxu0 0.0
    %1730 = vmatprep.subr.mxu0 0.0
    %1731 = vmatpush1.msra.mxu0 0.0
    %1732 = vmatprep.subr.mxu0 0.0
    %1733 = vmatpush1.msra.mxu0 0.0
    %1734 = vmatprep.subr.mxu0 0.0
    %1735 = vmatpush1.msra.mxu0 0.0
    %1736 = vmatprep.subr.mxu0 0.0
    %1737 = vmatpush1.msra.mxu0 0.0
    %1738 = vmatprep.subr.mxu0 0.0
    %1739 = vmatpush1.msra.mxu0 0.0
    %1740 = vmatprep.subr.mxu0 0.0
    %1741 = vmatpush1.msra.mxu0 0.0
    %1742 = vmatprep.subr.mxu0 0.0
    %1743 = vmatpush1.msra.mxu0 0.0
    %1744 = vmatprep.subr.mxu0 0.0
    %1745 = vmatpush1.msra.mxu0 0.0
    %1746 = vmatprep.subr.mxu0 0.0
    %1747 = vmatpush1.msra.mxu0 0.0
    %1748 = vmatprep.subr.mxu0 0.0
    %1749 = vmatpush1.msra.mxu0 0.0
    %1750 = vmatprep.subr.mxu0 0.0
    %1751 = vmatpush1.msra.mxu0 0.0
    %1752 = vmatprep.subr.mxu0 0.0
    %1753 = vmatpush1.msra.mxu0 0.0
    %1754 = vmatprep.mubr.f32.mxu0 0.0
    %v1755 = vand.u32 %v1526, 4294901760
    %v1756 = vsub.f32 %v1526, %v1755
    %1757 = vmatmul.mubr.f32.gmra.mrb[0].mxu0 %v1756
    %v1758 = vpop.f32.mrb[0].mxu0
    %v1759 = vadd.f32 %v1681, %v1758
    %v1760 = vpop.f32.mrb[0].mxu0
    %1761 = vmatprep.mubr.f32.mxu0 0.0
    %v1762 = vand.u32 %v1527, 4294901760
    %v1763 = vsub.f32 %v1527, %v1762
    %1764 = vmatmul.mubr.f32.gmra.mrb[0].mxu0 %v1763
    %v1765 = vpop.f32.mrb[0].mxu0
    %v1766 = vadd.f32 %v1687, %v1765
    %v1767 = vpop.f32.mrb[0].mxu0
    %1768 = vdwg.mxu0
    %1769 = vmatprep.subr.mxu0 0.0
    %1770 = vmatpush1.msra.mxu0 1.0
    %1771 = vmatprep.subr.mxu0 0.0
    %1772 = vmatpush1.msra.mxu0 1.0
    %1773 = vmatprep.subr.mxu0 0.0
    %1774 = vmatpush1.msra.mxu0 1.0
    %1775 = vmatprep.subr.mxu0 0.0
    %1776 = vmatpush1.msra.mxu0 1.0
    %1777 = vmatprep.subr.mxu0 0.0
    %1778 = vmatpush1.msra.mxu0 1.0
    %1779 = vmatprep.subr.mxu0 0.0
    %1780 = vmatpush1.msra.mxu0 1.0
    %1781 = vmatprep.subr.mxu0 0.0
    %1782 = vmatpush1.msra.mxu0 1.0
    %1783 = vmatprep.subr.mxu0 0.0
    %1784 = vmatpush1.msra.mxu0 1.0
    %1785 = vmatprep.subr.mxu0 0.0
    %1786 = vmatpush1.msra.mxu0 1.0
    %1787 = vmatprep.subr.mxu0 0.0
    %1788 = vmatpush1.msra.mxu0 1.0
    %1789 = vmatprep.subr.mxu0 0.0
    %1790 = vmatpush1.msra.mxu0 1.0
    %1791 = vmatprep.subr.mxu0 0.0
    %1792 = vmatpush1.msra.mxu0 1.0
    %1793 = vmatprep.subr.mxu0 0.0
    %1794 = vmatpush1.msra.mxu0 1.0
    %1795 = vmatprep.subr.mxu0 0.0
    %1796 = vmatpush1.msra.mxu0 1.0
    %1797 = vmatprep.subr.mxu0 0.0
    %1798 = vmatpush1.msra.mxu0 1.0
    %1799 = vmatprep.subr.mxu0 0.0
    %1800 = vmatpush1.msra.mxu0 1.0
    %1801 = vmatprep.subr.mxu0 0.0
    %1802 = vmatpush1.msra.mxu0 0.0
    %1803 = vmatprep.subr.mxu0 0.0
    %1804 = vmatpush1.msra.mxu0 0.0
    %1805 = vmatprep.subr.mxu0 0.0
    %1806 = vmatpush1.msra.mxu0 0.0
    %1807 = vmatprep.subr.mxu0 0.0
    %1808 = vmatpush1.msra.mxu0 0.0
    %1809 = vmatprep.subr.mxu0 0.0
    %1810 = vmatpush1.msra.mxu0 0.0
    %1811 = vmatprep.subr.mxu0 0.0
    %1812 = vmatpush1.msra.mxu0 0.0
    %1813 = vmatprep.subr.mxu0 0.0
    %1814 = vmatpush1.msra.mxu0 0.0
    %1815 = vmatprep.subr.mxu0 0.0
    %1816 = vmatpush1.msra.mxu0 0.0
    %1817 = vmatprep.subr.mxu0 0.0
    %1818 = vmatpush1.msra.mxu0 0.0
    %1819 = vmatprep.subr.mxu0 0.0
    %1820 = vmatpush1.msra.mxu0 0.0
    %1821 = vmatprep.subr.mxu0 0.0
    %1822 = vmatpush1.msra.mxu0 0.0
    %1823 = vmatprep.subr.mxu0 0.0
    %1824 = vmatpush1.msra.mxu0 0.0
    %1825 = vmatprep.subr.mxu0 0.0
    %1826 = vmatpush1.msra.mxu0 0.0
    %1827 = vmatprep.subr.mxu0 0.0
    %1828 = vmatpush1.msra.mxu0 0.0
    %1829 = vmatprep.subr.mxu0 0.0
    %1830 = vmatpush1.msra.mxu0 0.0
    %1831 = vmatprep.subr.mxu0 0.0
    %1832 = vmatpush1.msra.mxu0 0.0
    %1833 = vmatprep.mubr.f32.mxu0 0.0
    %v1834 = vand.u32 %v1526, 4294901760
    %v1835 = vsub.f32 %v1526, %v1834
    %v1836 = vand.u32 %v1835, 4294901760
    %1837 = vmatmul.mubr.f32.gmra.mrb[0].mxu0 %v1836
    %v1838 = vpop.f32.mrb[0].mxu0
    %v1839 = vadd.f32 %v1759, %v1838
    %v1840 = vpop.f32.mrb[0].mxu0
    %1841 = vmatprep.mubr.f32.mxu0 0.0
    %v1842 = vand.u32 %v1527, 4294901760
    %v1843 = vsub.f32 %v1527, %v1842
    %v1844 = vand.u32 %v1843, 4294901760
    %1845 = vmatmul.mubr.f32.gmra.mrb[0].mxu0 %v1844
    %v1846 = vpop.f32.mrb[0].mxu0
    %v1847 = vadd.f32 %v1766, %v1846
    %v1848 = vpop.f32.mrb[0].mxu0
    %1849 = vdwg.mxu0
    %1850 = vmatprep.subr.mxu0 0.0
    %1851 = vmatpush1.msra.mxu0 0.0
    %1852 = vmatprep.subr.mxu0 0.0
    %1853 = vmatpush1.msra.mxu0 0.0
    %1854 = vmatprep.subr.mxu0 0.0
    %1855 = vmatpush1.msra.mxu0 0.0
    %1856 = vmatprep.subr.mxu0 0.0
    %1857 = vmatpush1.msra.mxu0 0.0
    %1858 = vmatprep.subr.mxu0 0.0
    %1859 = vmatpush1.msra.mxu0 0.0
    %1860 = vmatprep.subr.mxu0 0.0
    %1861 = vmatpush1.msra.mxu0 0.0
    %1862 = vmatprep.subr.mxu0 0.0
    %1863 = vmatpush1.msra.mxu0 0.0
    %1864 = vmatprep.subr.mxu0 0.0
    %1865 = vmatpush1.msra.mxu0 0.0
    %1866 = vmatprep.subr.mxu0 0.0
    %1867 = vmatpush1.msra.mxu0 0.0
    %1868 = vmatprep.subr.mxu0 0.0
    %1869 = vmatpush1.msra.mxu0 0.0
    %1870 = vmatprep.subr.mxu0 0.0
    %1871 = vmatpush1.msra.mxu0 0.0
    %1872 = vmatprep.subr.mxu0 0.0
    %1873 = vmatpush1.msra.mxu0 0.0
    %1874 = vmatprep.subr.mxu0 0.0
    %1875 = vmatpush1.msra.mxu0 0.0
    %1876 = vmatprep.subr.mxu0 0.0
    %1877 = vmatpush1.msra.mxu0 0.0
    %1878 = vmatprep.subr.mxu0 0.0
    %1879 = vmatpush1.msra.mxu0 0.0
    %1880 = vmatprep.subr.mxu0 0.0
    %1881 = vmatpush1.msra.mxu0 0.0
    %1882 = vmatprep.subr.mxu0 0.0
    %1883 = vmatpush1.msra.mxu0 0.0
    %1884 = vmatprep.subr.mxu0 0.0
    %1885 = vmatpush1.msra.mxu0 0.0
    %1886 = vmatprep.subr.mxu0 0.0
    %1887 = vmatpush1.msra.mxu0 0.0
    %1888 = vmatprep.subr.mxu0 0.0
    %1889 = vmatpush1.msra.mxu0 0.0
    %1890 = vmatprep.subr.mxu0 0.0
    %1891 = vmatpush1.msra.mxu0 0.0
    %1892 = vmatprep.subr.mxu0 0.0
    %1893 = vmatpush1.msra.mxu0 0.0
    %1894 = vmatprep.subr.mxu0 0.0
    %1895 = vmatpush1.msra.mxu0 0.0
    %1896 = vmatprep.subr.mxu0 0.0
    %1897 = vmatpush1.msra.mxu0 0.0
    %1898 = vmatprep.subr.mxu0 0.0
    %1899 = vmatpush1.msra.mxu0 0.0
    %1900 = vmatprep.subr.mxu0 0.0
    %1901 = vmatpush1.msra.mxu0 0.0
    %1902 = vmatprep.subr.mxu0 0.0
    %1903 = vmatpush1.msra.mxu0 0.0
    %1904 = vmatprep.subr.mxu0 0.0
    %1905 = vmatpush1.msra.mxu0 0.0
    %1906 = vmatprep.subr.mxu0 0.0
    %1907 = vmatpush1.msra.mxu0 0.0
    %1908 = vmatprep.subr.mxu0 0.0
    %1909 = vmatpush1.msra.mxu0 0.0
    %1910 = vmatprep.subr.mxu0 0.0
    %1911 = vmatpush1.msra.mxu0 0.0
    %1912 = vmatprep.subr.mxu0 0.0
    %1913 = vmatpush1.msra.mxu0 0.0
    %1914 = vmatprep.mubr.f32.mxu0 0.0
    %v1915 = vand.u32 %v1526, 4294901760
    %1916 = vmatmul.mubr.f32.gmra.mrb[0].mxu0 %v1915
    %v1917 = vpop.f32.mrb[0].mxu0
    %v1918 = vadd.f32 %v1839, %v1917
    %v1919 = vpop.f32.mrb[0].mxu0
    %1920 = vmatprep.mubr.f32.mxu0 0.0
    %v1921 = vand.u32 %v1527, 4294901760
    %1922 = vmatmul.mubr.f32.gmra.mrb[0].mxu0 %v1921
    %v1923 = vpop.f32.mrb[0].mxu0
    %v1924 = vadd.f32 %v1847, %v1923
    %v1925 = vpop.f32.mrb[0].mxu0
    %1926 = vdwg.mxu0
    %1927 = vmatprep.subr.mxu0 0.0
    %1928 = vmatpush1.msra.mxu0 1.0
    %1929 = vmatprep.subr.mxu0 0.0
    %1930 = vmatpush1.msra.mxu0 1.0
    %1931 = vmatprep.subr.mxu0 0.0
    %1932 = vmatpush1.msra.mxu0 1.0
    %1933 = vmatprep.subr.mxu0 0.0
    %1934 = vmatpush1.msra.mxu0 1.0
    %1935 = vmatprep.subr.mxu0 0.0
    %1936 = vmatpush1.msra.mxu0 1.0
    %1937 = vmatprep.subr.mxu0 0.0
    %1938 = vmatpush1.msra.mxu0 1.0
    %1939 = vmatprep.subr.mxu0 0.0
    %1940 = vmatpush1.msra.mxu0 1.0
    %1941 = vmatprep.subr.mxu0 0.0
    %1942 = vmatpush1.msra.mxu0 1.0
    %1943 = vmatprep.subr.mxu0 0.0
    %1944 = vmatpush1.msra.mxu0 1.0
    %1945 = vmatprep.subr.mxu0 0.0
    %1946 = vmatpush1.msra.mxu0 1.0
    %1947 = vmatprep.subr.mxu0 0.0
    %1948 = vmatpush1.msra.mxu0 1.0
    %1949 = vmatprep.subr.mxu0 0.0
    %1950 = vmatpush1.msra.mxu0 1.0
    %1951 = vmatprep.subr.mxu0 0.0
    %1952 = vmatpush1.msra.mxu0 1.0
    %1953 = vmatprep.subr.mxu0 0.0
    %1954 = vmatpush1.msra.mxu0 1.0
    %1955 = vmatprep.subr.mxu0 0.0
    %1956 = vmatpush1.msra.mxu0 1.0
    %1957 = vmatprep.subr.mxu0 0.0
    %1958 = vmatpush1.msra.mxu0 1.0
    %1959 = vmatprep.subr.mxu0 0.0
    %1960 = vmatpush1.msra.mxu0 0.0
    %1961 = vmatprep.subr.mxu0 0.0
    %1962 = vmatpush1.msra.mxu0 0.0
    %1963 = vmatprep.subr.mxu0 0.0
    %1964 = vmatpush1.msra.mxu0 0.0
    %1965 = vmatprep.subr.mxu0 0.0
    %1966 = vmatpush1.msra.mxu0 0.0
    %1967 = vmatprep.subr.mxu0 0.0
    %1968 = vmatpush1.msra.mxu0 0.0
    %1969 = vmatprep.subr.mxu0 0.0
    %1970 = vmatpush1.msra.mxu0 0.0
    %1971 = vmatprep.subr.mxu0 0.0
    %1972 = vmatpush1.msra.mxu0 0.0
    %1973 = vmatprep.subr.mxu0 0.0
    %1974 = vmatpush1.msra.mxu0 0.0
    %1975 = vmatprep.subr.mxu0 0.0
    %1976 = vmatpush1.msra.mxu0 0.0
    %1977 = vmatprep.subr.mxu0 0.0
    %1978 = vmatpush1.msra.mxu0 0.0
    %1979 = vmatprep.subr.mxu0 0.0
    %1980 = vmatpush1.msra.mxu0 0.0
    %1981 = vmatprep.subr.mxu0 0.0
    %1982 = vmatpush1.msra.mxu0 0.0
    %1983 = vmatprep.subr.mxu0 0.0
    %1984 = vmatpush1.msra.mxu0 0.0
    %1985 = vmatprep.subr.mxu0 0.0
    %1986 = vmatpush1.msra.mxu0 0.0
    %1987 = vmatprep.subr.mxu0 0.0
    %1988 = vmatpush1.msra.mxu0 0.0
    %1989 = vmatprep.subr.mxu0 0.0
    %1990 = vmatpush1.msra.mxu0 0.0
    %1991 = vmatprep.mubr.f32.mxu0 0.0
    %v1992 = vand.u32 %v1526, 4294901760
    %1993 = vmatmul.mubr.f32.gmra.mrb[0].mxu0 %v1992
    %v1994 = vpop.f32.mrb[0].mxu0
    %v1995 = vadd.f32 %v1918, %v1994
    %v1996 = vpop.f32.mrb[0].mxu0
    %1997 = vmatprep.mubr.f32.mxu0 0.0
    %v1998 = vand.u32 %v1527, 4294901760
    %1999 = vmatmul.mubr.f32.gmra.mrb[0].mxu0 %v1998
    %v2000 = vpop.f32.mrb[0].mxu0
    %v2001 = vadd.f32 %v1924, %v2000
    %v2002 = vpop.f32.mrb[0].mxu0
    %2003 = vdwg.mxu0
    %v2004 = vmul.f32 %v564, %v1044
    %v2005 = vmul.f32 %v565, %v1045
    %v2006 = vrsqrt.pop %v2004
    %v2007 = vrsqrt.pop %v2005
    %v2008 = vmul.f32 %v1995, %v2006
    %v2009 = vmul.f32 %v2001, %v2007
    %v2010 = vmul.f32 %v80, %v84
    %v2011 = vmul.f32 %v81, %v85
    %2012 = vmatprep.subr.mxu0 0.0
    %2013 = vmatpush1.msra.mxu0 1.0
    %2014 = vmatprep.subr.mxu0 0.0
    %2015 = vmatpush1.msra.mxu0 1.0
    %2016 = vmatprep.subr.mxu0 0.0
    %2017 = vmatpush1.msra.mxu0 1.0
    %2018 = vmatprep.subr.mxu0 0.0
    %2019 = vmatpush1.msra.mxu0 1.0
    %2020 = vmatprep.subr.mxu0 0.0
    %2021 = vmatpush1.msra.mxu0 1.0
    %2022 = vmatprep.subr.mxu0 0.0
    %2023 = vmatpush1.msra.mxu0 1.0
    %2024 = vmatprep.subr.mxu0 0.0
    %2025 = vmatpush1.msra.mxu0 1.0
    %2026 = vmatprep.subr.mxu0 0.0
    %2027 = vmatpush1.msra.mxu0 1.0
    %2028 = vmatprep.subr.mxu0 0.0
    %2029 = vmatpush1.msra.mxu0 1.0
    %2030 = vmatprep.subr.mxu0 0.0
    %2031 = vmatpush1.msra.mxu0 1.0
    %2032 = vmatprep.subr.mxu0 0.0
    %2033 = vmatpush1.msra.mxu0 1.0
    %2034 = vmatprep.subr.mxu0 0.0
    %2035 = vmatpush1.msra.mxu0 1.0
    %2036 = vmatprep.subr.mxu0 0.0
    %2037 = vmatpush1.msra.mxu0 1.0
    %2038 = vmatprep.subr.mxu0 0.0
    %2039 = vmatpush1.msra.mxu0 1.0
    %2040 = vmatprep.subr.mxu0 0.0
    %2041 = vmatpush1.msra.mxu0 1.0
    %2042 = vmatprep.subr.mxu0 0.0
    %2043 = vmatpush1.msra.mxu0 1.0
    %2044 = vmatprep.subr.mxu0 0.0
    %2045 = vmatpush1.msra.mxu0 0.0
    %2046 = vmatprep.subr.mxu0 0.0
    %2047 = vmatpush1.msra.mxu0 0.0
    %2048 = vmatprep.subr.mxu0 0.0
    %2049 = vmatpush1.msra.mxu0 0.0
    %2050 = vmatprep.subr.mxu0 0.0
    %2051 = vmatpush1.msra.mxu0 0.0
    %2052 = vmatprep.subr.mxu0 0.0
    %2053 = vmatpush1.msra.mxu0 0.0
    %2054 = vmatprep.subr.mxu0 0.0
    %2055 = vmatpush1.msra.mxu0 0.0
    %2056 = vmatprep.subr.mxu0 0.0
    %2057 = vmatpush1.msra.mxu0 0.0
    %2058 = vmatprep.subr.mxu0 0.0
    %2059 = vmatpush1.msra.mxu0 0.0
    %2060 = vmatprep.subr.mxu0 0.0
    %2061 = vmatpush1.msra.mxu0 0.0
    %2062 = vmatprep.subr.mxu0 0.0
    %2063 = vmatpush1.msra.mxu0 0.0
    %2064 = vmatprep.subr.mxu0 0.0
    %2065 = vmatpush1.msra.mxu0 0.0
    %2066 = vmatprep.subr.mxu0 0.0
    %2067 = vmatpush1.msra.mxu0 0.0
    %2068 = vmatprep.subr.mxu0 0.0
    %2069 = vmatpush1.msra.mxu0 0.0
    %2070 = vmatprep.subr.mxu0 0.0
    %2071 = vmatpush1.msra.mxu0 0.0
    %2072 = vmatprep.subr.mxu0 0.0
    %2073 = vmatpush1.msra.mxu0 0.0
    %2074 = vmatprep.subr.mxu0 0.0
    %2075 = vmatpush1.msra.mxu0 0.0
    %2076 = vmatprep.mubr.f32.mxu0 0.0
    %v2077 = vand.u32 %v2010, 4294901760
    %v2078 = vsub.f32 %v2010, %v2077
    %v2079 = vand.u32 %v2078, 4294901760
    %v2080 = vsub.f32 %v2078, %v2079
    %v2081 = vand.u32 %v2080, 4294901760
    %2082 = vmatmul.mubr.f32.gmra.mrb[0].mxu0 %v2081
    %v2083 = vpop.f32.mrb[0].mxu0
    %v2084 = vadd.f32 0.0, %v2083
    %v2085 = vpop.f32.mrb[0].mxu0
    %2086 = vmatprep.mubr.f32.mxu0 0.0
    %v2087 = vand.u32 %v2011, 4294901760
    %v2088 = vsub.f32 %v2011, %v2087
    %v2089 = vand.u32 %v2088, 4294901760
    %v2090 = vsub.f32 %v2088, %v2089
    %v2091 = vand.u32 %v2090, 4294901760
    %2092 = vmatmul.mubr.f32.gmra.mrb[0].mxu0 %v2091
    %v2093 = vpop.f32.mrb[0].mxu0
    %v2094 = vadd.f32 0.0, %v2093
    %v2095 = vpop.f32.mrb[0].mxu0
    %2096 = vdwg.mxu0
    %2097 = vmatprep.subr.mxu0 0.0
    %2098 = vmatpush1.msra.mxu0 0.0
    %2099 = vmatprep.subr.mxu0 0.0
    %2100 = vmatpush1.msra.mxu0 0.0
    %2101 = vmatprep.subr.mxu0 0.0
    %2102 = vmatpush1.msra.mxu0 0.0
    %2103 = vmatprep.subr.mxu0 0.0
    %2104 = vmatpush1.msra.mxu0 0.0
    %2105 = vmatprep.subr.mxu0 0.0
    %2106 = vmatpush1.msra.mxu0 0.0
    %2107 = vmatprep.subr.mxu0 0.0
    %2108 = vmatpush1.msra.mxu0 0.0
    %2109 = vmatprep.subr.mxu0 0.0
    %2110 = vmatpush1.msra.mxu0 0.0
    %2111 = vmatprep.subr.mxu0 0.0
    %2112 = vmatpush1.msra.mxu0 0.0
    %2113 = vmatprep.subr.mxu0 0.0
    %2114 = vmatpush1.msra.mxu0 0.0
    %2115 = vmatprep.subr.mxu0 0.0
    %2116 = vmatpush1.msra.mxu0 0.0
    %2117 = vmatprep.subr.mxu0 0.0
    %2118 = vmatpush1.msra.mxu0 0.0
    %2119 = vmatprep.subr.mxu0 0.0
    %2120 = vmatpush1.msra.mxu0 0.0
    %2121 = vmatprep.subr.mxu0 0.0
    %2122 = vmatpush1.msra.mxu0 0.0
    %2123 = vmatprep.subr.mxu0 0.0
    %2124 = vmatpush1.msra.mxu0 0.0
    %2125 = vmatprep.subr.mxu0 0.0
    %2126 = vmatpush1.msra.mxu0 0.0
    %2127 = vmatprep.subr.mxu0 0.0
    %2128 = vmatpush1.msra.mxu0 0.0
    %2129 = vmatprep.subr.mxu0 0.0
    %2130 = vmatpush1.msra.mxu0 0.0
    %2131 = vmatprep.subr.mxu0 0.0
    %2132 = vmatpush1.msra.mxu0 0.0
    %2133 = vmatprep.subr.mxu0 0.0
    %2134 = vmatpush1.msra.mxu0 0.0
    %2135 = vmatprep.subr.mxu0 0.0
    %2136 = vmatpush1.msra.mxu0 0.0
    %2137 = vmatprep.subr.mxu0 0.0
    %2138 = vmatpush1.msra.mxu0 0.0
    %2139 = vmatprep.subr.mxu0 0.0
    %2140 = vmatpush1.msra.mxu0 0.0
    %2141 = vmatprep.subr.mxu0 0.0
    %2142 = vmatpush1.msra.mxu0 0.0
    %2143 = vmatprep.subr.mxu0 0.0
    %2144 = vmatpush1.msra.mxu0 0.0
    %2145 = vmatprep.subr.mxu0 0.0
    %2146 = vmatpush1.msra.mxu0 0.0
    %2147 = vmatprep.subr.mxu0 0.0
    %2148 = vmatpush1.msra.mxu0 0.0
    %2149 = vmatprep.subr.mxu0 0.0
    %2150 = vmatpush1.msra.mxu0 0.0
    %2151 = vmatprep.subr.mxu0 0.0
    %2152 = vmatpush1.msra.mxu0 0.0
    %2153 = vmatprep.subr.mxu0 0.0
    %2154 = vmatpush1.msra.mxu0 0.0
    %2155 = vmatprep.subr.mxu0 0.0
    %2156 = vmatpush1.msra.mxu0 0.0
    %2157 = vmatprep.subr.mxu0 0.0
    %2158 = vmatpush1.msra.mxu0 0.0
    %2159 = vmatprep.subr.mxu0 0.0
    %2160 = vmatpush1.msra.mxu0 0.0
    %2161 = vmatprep.mubr.f32.mxu0 0.0
    %v2162 = vand.u32 %v2010, 4294901760
    %2163 = vmatmul.mubr.f32.gmra.mrb[0].mxu0 %v2162
    %v2164 = vpop.f32.mrb[0].mxu0
    %v2165 = vadd.f32 %v2084, %v2164
    %v2166 = vpop.f32.mrb[0].mxu0
    %2167 = vmatprep.mubr.f32.mxu0 0.0
    %v2168 = vand.u32 %v2011, 4294901760
    %2169 = vmatmul.mubr.f32.gmra.mrb[0].mxu0 %v2168
    %v2170 = vpop.f32.mrb[0].mxu0
    %v2171 = vadd.f32 %v2094, %v2170
    %v2172 = vpop.f32.mrb[0].mxu0
    %2173 = vdwg.mxu0
    %2174 = vmatprep.subr.mxu0 0.0
    %2175 = vmatpush1.msra.mxu0 0.0
    %2176 = vmatprep.subr.mxu0 0.0
    %2177 = vmatpush1.msra.mxu0 0.0
    %2178 = vmatprep.subr.mxu0 0.0
    %2179 = vmatpush1.msra.mxu0 0.0
    %2180 = vmatprep.subr.mxu0 0.0
    %2181 = vmatpush1.msra.mxu0 0.0
    %2182 = vmatprep.subr.mxu0 0.0
    %2183 = vmatpush1.msra.mxu0 0.0
    %2184 = vmatprep.subr.mxu0 0.0
    %2185 = vmatpush1.msra.mxu0 0.0
    %2186 = vmatprep.subr.mxu0 0.0
    %2187 = vmatpush1.msra.mxu0 0.0
    %2188 = vmatprep.subr.mxu0 0.0
    %2189 = vmatpush1.msra.mxu0 0.0
    %2190 = vmatprep.subr.mxu0 0.0
    %2191 = vmatpush1.msra.mxu0 0.0
    %2192 = vmatprep.subr.mxu0 0.0
    %2193 = vmatpush1.msra.mxu0 0.0
    %2194 = vmatprep.subr.mxu0 0.0
    %2195 = vmatpush1.msra.mxu0 0.0
    %2196 = vmatprep.subr.mxu0 0.0
    %2197 = vmatpush1.msra.mxu0 0.0
    %2198 = vmatprep.subr.mxu0 0.0
    %2199 = vmatpush1.msra.mxu0 0.0
    %2200 = vmatprep.subr.mxu0 0.0
    %2201 = vmatpush1.msra.mxu0 0.0
    %2202 = vmatprep.subr.mxu0 0.0
    %2203 = vmatpush1.msra.mxu0 0.0
    %2204 = vmatprep.subr.mxu0 0.0
    %2205 = vmatpush1.msra.mxu0 0.0
    %2206 = vmatprep.subr.mxu0 0.0
    %2207 = vmatpush1.msra.mxu0 0.0
    %2208 = vmatprep.subr.mxu0 0.0
    %2209 = vmatpush1.msra.mxu0 0.0
    %2210 = vmatprep.subr.mxu0 0.0
    %2211 = vmatpush1.msra.mxu0 0.0
    %2212 = vmatprep.subr.mxu0 0.0
    %2213 = vmatpush1.msra.mxu0 0.0
    %2214 = vmatprep.subr.mxu0 0.0
    %2215 = vmatpush1.msra.mxu0 0.0
    %2216 = vmatprep.subr.mxu0 0.0
    %2217 = vmatpush1.msra.mxu0 0.0
    %2218 = vmatprep.subr.mxu0 0.0
    %2219 = vmatpush1.msra.mxu0 0.0
    %2220 = vmatprep.subr.mxu0 0.0
    %2221 = vmatpush1.msra.mxu0 0.0
    %2222 = vmatprep.subr.mxu0 0.0
    %2223 = vmatpush1.msra.mxu0 0.0
    %2224 = vmatprep.subr.mxu0 0.0
    %2225 = vmatpush1.msra.mxu0 0.0
    %2226 = vmatprep.subr.mxu0 0.0
    %2227 = vmatpush1.msra.mxu0 0.0
    %2228 = vmatprep.subr.mxu0 0.0
    %2229 = vmatpush1.msra.mxu0 0.0
    %2230 = vmatprep.subr.mxu0 0.0
    %2231 = vmatpush1.msra.mxu0 0.0
    %2232 = vmatprep.subr.mxu0 0.0
    %2233 = vmatpush1.msra.mxu0 0.0
    %2234 = vmatprep.subr.mxu0 0.0
    %2235 = vmatpush1.msra.mxu0 0.0
    %2236 = vmatprep.subr.mxu0 0.0
    %2237 = vmatpush1.msra.mxu0 0.0
    %2238 = vmatprep.mubr.f32.mxu0 0.0
    %v2239 = vand.u32 %v2010, 4294901760
    %v2240 = vsub.f32 %v2010, %v2239
    %2241 = vmatmul.mubr.f32.gmra.mrb[0].mxu0 %v2240
    %v2242 = vpop.f32.mrb[0].mxu0
    %v2243 = vadd.f32 %v2165, %v2242
    %v2244 = vpop.f32.mrb[0].mxu0
    %2245 = vmatprep.mubr.f32.mxu0 0.0
    %v2246 = vand.u32 %v2011, 4294901760
    %v2247 = vsub.f32 %v2011, %v2246
    %2248 = vmatmul.mubr.f32.gmra.mrb[0].mxu0 %v2247
    %v2249 = vpop.f32.mrb[0].mxu0
    %v2250 = vadd.f32 %v2171, %v2249
    %v2251 = vpop.f32.mrb[0].mxu0
    %2252 = vdwg.mxu0
    %2253 = vmatprep.subr.mxu0 0.0
    %2254 = vmatpush1.msra.mxu0 1.0
    %2255 = vmatprep.subr.mxu0 0.0
    %2256 = vmatpush1.msra.mxu0 1.0
    %2257 = vmatprep.subr.mxu0 0.0
    %2258 = vmatpush1.msra.mxu0 1.0
    %2259 = vmatprep.subr.mxu0 0.0
    %2260 = vmatpush1.msra.mxu0 1.0
    %2261 = vmatprep.subr.mxu0 0.0
    %2262 = vmatpush1.msra.mxu0 1.0
    %2263 = vmatprep.subr.mxu0 0.0
    %2264 = vmatpush1.msra.mxu0 1.0
    %2265 = vmatprep.subr.mxu0 0.0
    %2266 = vmatpush1.msra.mxu0 1.0
    %2267 = vmatprep.subr.mxu0 0.0
    %2268 = vmatpush1.msra.mxu0 1.0
    %2269 = vmatprep.subr.mxu0 0.0
    %2270 = vmatpush1.msra.mxu0 1.0
    %2271 = vmatprep.subr.mxu0 0.0
    %2272 = vmatpush1.msra.mxu0 1.0
    %2273 = vmatprep.subr.mxu0 0.0
    %2274 = vmatpush1.msra.mxu0 1.0
    %2275 = vmatprep.subr.mxu0 0.0
    %2276 = vmatpush1.msra.mxu0 1.0
    %2277 = vmatprep.subr.mxu0 0.0
    %2278 = vmatpush1.msra.mxu0 1.0
    %2279 = vmatprep.subr.mxu0 0.0
    %2280 = vmatpush1.msra.mxu0 1.0
    %2281 = vmatprep.subr.mxu0 0.0
    %2282 = vmatpush1.msra.mxu0 1.0
    %2283 = vmatprep.subr.mxu0 0.0
    %2284 = vmatpush1.msra.mxu0 1.0
    %2285 = vmatprep.subr.mxu0 0.0
    %2286 = vmatpush1.msra.mxu0 0.0
    %2287 = vmatprep.subr.mxu0 0.0
    %2288 = vmatpush1.msra.mxu0 0.0
    %2289 = vmatprep.subr.mxu0 0.0
    %2290 = vmatpush1.msra.mxu0 0.0
    %2291 = vmatprep.subr.mxu0 0.0
    %2292 = vmatpush1.msra.mxu0 0.0
    %2293 = vmatprep.subr.mxu0 0.0
    %2294 = vmatpush1.msra.mxu0 0.0
    %2295 = vmatprep.subr.mxu0 0.0
    %2296 = vmatpush1.msra.mxu0 0.0
    %2297 = vmatprep.subr.mxu0 0.0
    %2298 = vmatpush1.msra.mxu0 0.0
    %2299 = vmatprep.subr.mxu0 0.0
    %2300 = vmatpush1.msra.mxu0 0.0
    %2301 = vmatprep.subr.mxu0 0.0
    %2302 = vmatpush1.msra.mxu0 0.0
    %2303 = vmatprep.subr.mxu0 0.0
    %2304 = vmatpush1.msra.mxu0 0.0
    %2305 = vmatprep.subr.mxu0 0.0
    %2306 = vmatpush1.msra.mxu0 0.0
    %2307 = vmatprep.subr.mxu0 0.0
    %2308 = vmatpush1.msra.mxu0 0.0
    %2309 = vmatprep.subr.mxu0 0.0
    %2310 = vmatpush1.msra.mxu0 0.0
    %2311 = vmatprep.subr.mxu0 0.0
    %2312 = vmatpush1.msra.mxu0 0.0
    %2313 = vmatprep.subr.mxu0 0.0
    %2314 = vmatpush1.msra.mxu0 0.0
    %2315 = vmatprep.subr.mxu0 0.0
    %2316 = vmatpush1.msra.mxu0 0.0
    %2317 = vmatprep.mubr.f32.mxu0 0.0
    %v2318 = vand.u32 %v2010, 4294901760
    %v2319 = vsub.f32 %v2010, %v2318
    %v2320 = vand.u32 %v2319, 4294901760
    %2321 = vmatmul.mubr.f32.gmra.mrb[0].mxu0 %v2320
    %v2322 = vpop.f32.mrb[0].mxu0
    %v2323 = vadd.f32 %v2243, %v2322
    %v2324 = vpop.f32.mrb[0].mxu0
    %2325 = vmatprep.mubr.f32.mxu0 0.0
    %v2326 = vand.u32 %v2011, 4294901760
    %v2327 = vsub.f32 %v2011, %v2326
    %v2328 = vand.u32 %v2327, 4294901760
    %2329 = vmatmul.mubr.f32.gmra.mrb[0].mxu0 %v2328
    %v2330 = vpop.f32.mrb[0].mxu0
    %v2331 = vadd.f32 %v2250, %v2330
    %v2332 = vpop.f32.mrb[0].mxu0
    %2333 = vdwg.mxu0
    %2334 = vmatprep.subr.mxu0 0.0
    %2335 = vmatpush1.msra.mxu0 0.0
    %2336 = vmatprep.subr.mxu0 0.0
    %2337 = vmatpush1.msra.mxu0 0.0
    %2338 = vmatprep.subr.mxu0 0.0
    %2339 = vmatpush1.msra.mxu0 0.0
    %2340 = vmatprep.subr.mxu0 0.0
    %2341 = vmatpush1.msra.mxu0 0.0
    %2342 = vmatprep.subr.mxu0 0.0
    %2343 = vmatpush1.msra.mxu0 0.0
    %2344 = vmatprep.subr.mxu0 0.0
    %2345 = vmatpush1.msra.mxu0 0.0
    %2346 = vmatprep.subr.mxu0 0.0
    %2347 = vmatpush1.msra.mxu0 0.0
    %2348 = vmatprep.subr.mxu0 0.0
    %2349 = vmatpush1.msra.mxu0 0.0
    %2350 = vmatprep.subr.mxu0 0.0
    %2351 = vmatpush1.msra.mxu0 0.0
    %2352 = vmatprep.subr.mxu0 0.0
    %2353 = vmatpush1.msra.mxu0 0.0
    %2354 = vmatprep.subr.mxu0 0.0
    %2355 = vmatpush1.msra.mxu0 0.0
    %2356 = vmatprep.subr.mxu0 0.0
    %2357 = vmatpush1.msra.mxu0 0.0
    %2358 = vmatprep.subr.mxu0 0.0
    %2359 = vmatpush1.msra.mxu0 0.0
    %2360 = vmatprep.subr.mxu0 0.0
    %2361 = vmatpush1.msra.mxu0 0.0
    %2362 = vmatprep.subr.mxu0 0.0
    %2363 = vmatpush1.msra.mxu0 0.0
    %2364 = vmatprep.subr.mxu0 0.0
    %2365 = vmatpush1.msra.mxu0 0.0
    %2366 = vmatprep.subr.mxu0 0.0
    %2367 = vmatpush1.msra.mxu0 0.0
    %2368 = vmatprep.subr.mxu0 0.0
    %2369 = vmatpush1.msra.mxu0 0.0
    %2370 = vmatprep.subr.mxu0 0.0
    %2371 = vmatpush1.msra.mxu0 0.0
    %2372 = vmatprep.subr.mxu0 0.0
    %2373 = vmatpush1.msra.mxu0 0.0
    %2374 = vmatprep.subr.mxu0 0.0
    %2375 = vmatpush1.msra.mxu0 0.0
    %2376 = vmatprep.subr.mxu0 0.0
    %2377 = vmatpush1.msra.mxu0 0.0
    %2378 = vmatprep.subr.mxu0 0.0
    %2379 = vmatpush1.msra.mxu0 0.0
    %2380 = vmatprep.subr.mxu0 0.0
    %2381 = vmatpush1.msra.mxu0 0.0
    %2382 = vmatprep.subr.mxu0 0.0
    %2383 = vmatpush1.msra.mxu0 0.0
    %2384 = vmatprep.subr.mxu0 0.0
    %2385 = vmatpush1.msra.mxu0 0.0
    %2386 = vmatprep.subr.mxu0 0.0
    %2387 = vmatpush1.msra.mxu0 0.0
    %2388 = vmatprep.subr.mxu0 0.0
    %2389 = vmatpush1.msra.mxu0 0.0
    %2390 = vmatprep.subr.mxu0 0.0
    %2391 = vmatpush1.msra.mxu0 0.0
    %2392 = vmatprep.subr.mxu0 0.0
    %2393 = vmatpush1.msra.mxu0 0.0
    %2394 = vmatprep.subr.mxu0 0.0
    %2395 = vmatpush1.msra.mxu0 0.0
    %2396 = vmatprep.subr.mxu0 0.0
    %2397 = vmatpush1.msra.mxu0 0.0
    %2398 = vmatprep.mubr.f32.mxu0 0.0
    %v2399 = vand.u32 %v2010, 4294901760
    %2400 = vmatmul.mubr.f32.gmra.mrb[0].mxu0 %v2399
    %v2401 = vpop.f32.mrb[0].mxu0
    %v2402 = vadd.f32 %v2323, %v2401
    %v2403 = vpop.f32.mrb[0].mxu0
    %2404 = vmatprep.mubr.f32.mxu0 0.0
    %v2405 = vand.u32 %v2011, 4294901760
    %2406 = vmatmul.mubr.f32.gmra.mrb[0].mxu0 %v2405
    %v2407 = vpop.f32.mrb[0].mxu0
    %v2408 = vadd.f32 %v2331, %v2407
    %v2409 = vpop.f32.mrb[0].mxu0
    %2410 = vdwg.mxu0
    %2411 = vmatprep.subr.mxu0 0.0
    %2412 = vmatpush1.msra.mxu0 1.0
    %2413 = vmatprep.subr.mxu0 0.0
    %2414 = vmatpush1.msra.mxu0 1.0
    %2415 = vmatprep.subr.mxu0 0.0
    %2416 = vmatpush1.msra.mxu0 1.0
    %2417 = vmatprep.subr.mxu0 0.0
    %2418 = vmatpush1.msra.mxu0 1.0
    %2419 = vmatprep.subr.mxu0 0.0
    %2420 = vmatpush1.msra.mxu0 1.0
    %2421 = vmatprep.subr.mxu0 0.0
    %2422 = vmatpush1.msra.mxu0 1.0
    %2423 = vmatprep.subr.mxu0 0.0
    %2424 = vmatpush1.msra.mxu0 1.0
    %2425 = vmatprep.subr.mxu0 0.0
    %2426 = vmatpush1.msra.mxu0 1.0
    %2427 = vmatprep.subr.mxu0 0.0
    %2428 = vmatpush1.msra.mxu0 1.0
    %2429 = vmatprep.subr.mxu0 0.0
    %2430 = vmatpush1.msra.mxu0 1.0
    %2431 = vmatprep.subr.mxu0 0.0
    %2432 = vmatpush1.msra.mxu0 1.0
    %2433 = vmatprep.subr.mxu0 0.0
    %2434 = vmatpush1.msra.mxu0 1.0
    %2435 = vmatprep.subr.mxu0 0.0
    %2436 = vmatpush1.msra.mxu0 1.0
    %2437 = vmatprep.subr.mxu0 0.0
    %2438 = vmatpush1.msra.mxu0 1.0
    %2439 = vmatprep.subr.mxu0 0.0
    %2440 = vmatpush1.msra.mxu0 1.0
    %2441 = vmatprep.subr.mxu0 0.0
    %2442 = vmatpush1.msra.mxu0 1.0
    %2443 = vmatprep.subr.mxu0 0.0
    %2444 = vmatpush1.msra.mxu0 0.0
    %2445 = vmatprep.subr.mxu0 0.0
    %2446 = vmatpush1.msra.mxu0 0.0
    %2447 = vmatprep.subr.mxu0 0.0
    %2448 = vmatpush1.msra.mxu0 0.0
    %2449 = vmatprep.subr.mxu0 0.0
    %2450 = vmatpush1.msra.mxu0 0.0
    %2451 = vmatprep.subr.mxu0 0.0
    %2452 = vmatpush1.msra.mxu0 0.0
    %2453 = vmatprep.subr.mxu0 0.0
    %2454 = vmatpush1.msra.mxu0 0.0
    %2455 = vmatprep.subr.mxu0 0.0
    %2456 = vmatpush1.msra.mxu0 0.0
    %2457 = vmatprep.subr.mxu0 0.0
    %2458 = vmatpush1.msra.mxu0 0.0
    %2459 = vmatprep.subr.mxu0 0.0
    %2460 = vmatpush1.msra.mxu0 0.0
    %2461 = vmatprep.subr.mxu0 0.0
    %2462 = vmatpush1.msra.mxu0 0.0
    %2463 = vmatprep.subr.mxu0 0.0
    %2464 = vmatpush1.msra.mxu0 0.0
    %2465 = vmatprep.subr.mxu0 0.0
    %2466 = vmatpush1.msra.mxu0 0.0
    %2467 = vmatprep.subr.mxu0 0.0
    %2468 = vmatpush1.msra.mxu0 0.0
    %2469 = vmatprep.subr.mxu0 0.0
    %2470 = vmatpush1.msra.mxu0 0.0
    %2471 = vmatprep.subr.mxu0 0.0
    %2472 = vmatpush1.msra.mxu0 0.0
    %2473 = vmatprep.subr.mxu0 0.0
    %2474 = vmatpush1.msra.mxu0 0.0
    %2475 = vmatprep.mubr.f32.mxu0 0.0
    %v2476 = vand.u32 %v2010, 4294901760
    %2477 = vmatmul.mubr.f32.gmra.mrb[0].mxu0 %v2476
    %v2478 = vpop.f32.mrb[0].mxu0
    %v2479 = vadd.f32 %v2402, %v2478
    %v2480 = vpop.f32.mrb[0].mxu0
    %2481 = vmatprep.mubr.f32.mxu0 0.0
    %v2482 = vand.u32 %v2011, 4294901760
    %2483 = vmatmul.mubr.f32.gmra.mrb[0].mxu0 %v2482
    %v2484 = vpop.f32.mrb[0].mxu0
    %v2485 = vadd.f32 %v2408, %v2484
    %v2486 = vpop.f32.mrb[0].mxu0
    %2487 = vdwg.mxu0
    %v2488 = vmul.f32 %v564, %v1524
    %v2489 = vmul.f32 %v565, %v1525
    %v2490 = vrsqrt.pop %v2488
    %v2491 = vrsqrt.pop %v2489
    %v2492 = vmul.f32 %v2479, %v2490
    %v2493 = vmul.f32 %v2485, %v2491
    %v2494 = vsub.f32 0.5, %v2008
    %v2495 = vsub.f32 0.5, %v2009
    %v2496 = vadd.f32 %v2494, %v2492
    %v2497 = vadd.f32 %v2495, %v2493
    %v2498 = vmax.f32 %v2496, 0.0
    %v2499 = vmax.f32 %v2497, 0.0
    %v2500 = vld [vmem:[#allocation8] sm:$0x1]
    %vm2501 = vcmask 7168
    %v2502 = vsel %vm2501, %v2498, 0.0
    %v2503 = vsel %vm2501, %v2499, 0.0
    %v2504 = vadd.f32 %v2502, %v2503
    %v2505 = vrot.slane %v2504, 4
    %v2506 = vadd.f32 %v2504, %v2505
    %v2507 = vrot.slane %v2506, 2
    %v2508 = vadd.f32 %v2506, %v2507
    %v2509 = vrot.slane %v2508, 1
    %v2510 = vadd.f32 %v2508, %v2509
    %v2511 = vadd.f32 %v2500, %v2510
    %vm2512 = vcmask 0
    %2513 = vst.msk [vmem:[#allocation8] sm:$0x1] %vm2512, %v2511
    // Predicated region
    $region30: #{tpu_custom_call.1} parent=1 // pred_check
      _
    $region31: #{tpu_custom_call.1} parent=1 // pred_check_branch
      %2515 = sbr.rel (0) target = $region33
    $region32: #{tpu_custom_call.1} parent=1 // pred_region
      %s2517 = ssub.s32 16, 16
      %2518 = vsyncadd [#allocation4], %s2517
      %s2520 = sshll.u32 [#allocation8], 4
      %s2521 = int_to_ptr.vmem [resolvable:$true] %s2520
      %2523 = dma.vmem_to_hbm [thread:$0]  %s2521, 16, %s3, [#allocation4]
    $region33: #{tpu_custom_call.1} parent=1 // pred_fallthru
      _
    // Predicated region
    $region34: #{tpu_custom_call.1} parent=1 // pred_check
      _
    $region35: #{tpu_custom_call.1} parent=1 // pred_check_branch
      %2525 = sbr.rel (0) target = $region37
    $region36: #{tpu_custom_call.1} parent=1 // pred_region
      %2526 = dma.done [#allocation4], 16
    $region37: #{tpu_custom_call.1} parent=1 // pred_fallthru
      _
    %2527 = vsyncpa [#allocation3], 1
    %2528 = vsyncpa [#allocation6], 1
    %2529 = vsyncpa [#allocation4], 1

</llo_original>
